<compile_context>
chip_gen: v7x
topology: tpu7x:2x2x1
jax: 0.10.0
libtpu: 0.0.40
codegen_flags: <defaults>
</compile_context>

<pallas_src>
import functools

import jax
import jax.numpy as jnp
import numpy as np
from jax.experimental import pallas as pl
from jax.experimental.pallas import tpu as pltpu

LANE = 128  # TPU lane width; hidden feature dims are zero-padded to a multiple of this


# ---------------------------------------------------------------------------
# Fused kernel: one grid step = one graph; all layers + pool + head fused.
# ---------------------------------------------------------------------------
def fused_forward_kernel(num_layers, inv_n, a_ref, x_ref, *rest):
    # a_ref: (N, N)    row-normalized adjacency of this graph, bf16
    # x_ref: (N, Fin)  node features of this graph, f32
    # rest:  [wp bf16, bp f32, ws bf16, wn bf16, bn f32] * L, wl bf16, bl f32, o_ref
    layer_refs = rest[: 5 * num_layers]
    wl_ref, bl_ref, o_ref = rest[5 * num_layers:]

    h = x_ref[...]  # f32; stays resident for the whole forward (never hits HBM)
    for l in range(num_layers):
        wp_ref, bp_ref, ws_ref, wn_ref, bn_ref = layer_refs[5 * l: 5 * l + 5]

        # projection: relu(h @ Wp + bp) — bf16 MXU operands, f32 accumulate,
        # bias/relu kept f32 (v5e has no bf16 VPU path).
        hp = jnp.dot(h.astype(jnp.bfloat16), wp_ref[...],
                     preferred_element_type=jnp.float32) + bp_ref[...]
        hp = jnp.maximum(hp, 0.0)
        hp16 = hp.astype(jnp.bfloat16)

        # mean neighbor aggregation: one matmul per graph, no axis-0 concat.
        hn = jnp.dot(a_ref[...], hp16, preferred_element_type=jnp.float32)

        # SAGEConv: two f32-accumulated dots instead of a lane-concat matmul.
        h = (jnp.dot(hp16, ws_ref[...], preferred_element_type=jnp.float32)
             + jnp.dot(hn.astype(jnp.bfloat16), wn_ref[...],
                       preferred_element_type=jnp.float32)
             + bn_ref[...])
        # activation (F.relu); dropout is identity in eval mode.
        h = jnp.maximum(h, 0.0)

    # mean over nodes: sublane reduction on the XLU (no dense pooling matrix).
    pooled = jnp.sum(h, axis=0, keepdims=True) * inv_n            # (1, Fp) f32
    logits = jnp.dot(pooled.astype(jnp.bfloat16), wl_ref[...],
                     preferred_element_type=jnp.float32) + bl_ref[...]
    o_ref[...] = logits.astype(o_ref.dtype)


# ---------------------------------------------------------------------------
# One-time parameter packing (hoisted out of the forward wrapper):
# zero-pad hidden dims to 128 lanes, cast matmul weights to bf16.
# ---------------------------------------------------------------------------
def _round_up(x, m=LANE):
    return ((x + m - 1) // m) * m


def prepare_params(params, in_feats):
    out_feats = params["layers"][0]["ws"].shape[1]
    fp = _round_up(max(in_feats, out_feats))

    def pad2(w, rows, cols):
        return jnp.pad(w, ((0, rows - w.shape[0]), (0, cols - w.shape[1])))

    prepared = {"layers": [], "fp": fp}
    fin = in_feats  # kernel-visible input width of the current layer
    for p in params["layers"]:
        prepared["layers"].append({
            "wp": pad2(p["wp"], fin, fp).astype(jnp.bfloat16),
            "bp": pad2(p["bp"], 1, fp),                    # f32
            "ws": pad2(p["ws"], fp, fp).astype(jnp.bfloat16),
            "wn": pad2(p["wn"], fp, fp).astype(jnp.bfloat16),
            "bn": pad2(p["bn"], 1, fp),                    # f32
        })
        fin = fp
    prepared["wl"] = pad2(params["wl"], fp, params["wl"].shape[1]).astype(jnp.bfloat16)
    prepared["bl"] = params["bl"]                          # f32, (1, C)
    return prepared


# ---------------------------------------------------------------------------
# Forward wrapper: single pallas_call, grid over the batch of graphs.
# ---------------------------------------------------------------------------
def graph_cls_graphsage_forward(a_norm, feat, prepared):
    B, N, Fin = feat.shape
    layers = prepared["layers"]
    L = len(layers)
    C = prepared["wl"].shape[1]
    fp = prepared["fp"]

    # bf16 adjacency halves the A stream's HBM bytes; pass bf16 upstream to avoid
    # even this one cast per forward.
    a_bf16 = a_norm if a_norm.dtype == jnp.bfloat16 else a_norm.astype(jnp.bfloat16)

    flat_inputs = [a_bf16, feat]
    in_specs = [
        pl.BlockSpec((None, N, N), lambda b: (b, 0, 0)),    # adjacency of graph b
        pl.BlockSpec((None, N, Fin), lambda b: (b, 0, 0)),  # features of graph b
    ]
    for p in layers:
        for w in (p["wp"], p["bp"], p["ws"], p["wn"], p["bn"]):
            flat_inputs.append(w)
            in_specs.append(pl.BlockSpec(w.shape, lambda b: (0, 0)))
    for w in (prepared["wl"], prepared["bl"]):
        flat_inputs.append(w)
        in_specs.append(pl.BlockSpec(w.shape, lambda b: (0, 0)))

    # advisory cost estimate for XLA's scheduler (padded dims)
    flops = 0
    fin = Fin
    for _ in layers:
        flops += 2 * B * N * fin * fp          # projection
        flops += 2 * B * N * N * fp            # neighbor aggregation
        flops += 2 * B * N * fp * fp * 2       # fc_self + fc_neigh
        fin = fp
    flops += 2 * B * fp * C                    # classifier
    bytes_accessed = sum(int(x.size) * x.dtype.itemsize for x in flat_inputs)
    bytes_accessed += B * C * 4

    kernel = functools.partial(fused_forward_kernel, L, 1.0 / N)
    out = pl.pallas_call(
        kernel,
        grid=(B,),
        out_shape=jax.ShapeDtypeStruct((B, 1, C), jnp.float32),
        in_specs=in_specs,
        out_specs=pl.BlockSpec((None, 1, C), lambda b: (b, 0, 0)),
        compiler_params=pltpu.CompilerParams(
            dimension_semantics=("parallel",),   # graphs are independent -> megacore
        ),
        cost_estimate=pl.CostEstimate(
            flops=flops, transcendentals=0, bytes_accessed=bytes_accessed
        ),
    )(*flat_inputs)
    return out.reshape(B, C)


# ---------------------------------------------------------------------------
# Params / reference.
# ---------------------------------------------------------------------------
def init_params(key, in_feats, out_feats, num_layers, num_classes):
    params = {"layers": []}
    fin = in_feats
    for _ in range(num_layers):
        key, k1, k2, k3, k4 = jax.random.split(key, 5)
        params["layers"].append(
            {
                # projection Linear(in_feats, in_feats)
                "wp": jax.random.normal(k1, (fin, fin), jnp.float32) * 0.1,
                "bp": jax.random.normal(k2, (1, fin), jnp.float32) * 0.1,
                # SAGEConv fc_self / fc_neigh (+bias)
                "ws": jax.random.normal(k3, (fin, out_feats), jnp.float32) * 0.1,
                "wn": jax.random.normal(k4, (fin, out_feats), jnp.float32) * 0.1,
                "bn": jnp.zeros((1, out_feats), jnp.float32),
            }
        )
        fin = out_feats
    key, k1, k2 = jax.random.split(key, 3)
    params["wl"] = jax.random.normal(k1, (out_feats, num_classes), jnp.float32) * 0.1
    params["bl"] = jax.random.normal(k2, (1, num_classes), jnp.float32) * 0.1
    return params


def reference_forward(a_norm, feat, params):
    """Pure-JAX f32 reference for correctness check."""
    h = feat
    for p in params["layers"]:
        hp = jax.nn.relu(h @ p["wp"] + p["bp"])
        h_neigh = jnp.einsum("bij,bjf->bif", a_norm, hp)
        h = jax.nn.relu(hp @ p["ws"] + h_neigh @ p["wn"] + p["bn"])
    pooled = h.mean(axis=1)
    return pooled @ params["wl"] + params["bl"]


if __name__ == "__main__":
    # Small, module-consistent shapes.
    B, N = 2, 16          # batch of graphs, nodes per graph
    in_feats = 32
    out_feats = 32
    num_layers = 2
    num_classes = 8

    key = jax.random.PRNGKey(0)
    key, kf, ka, kp = jax.random.split(key, 4)

    # node features [B, N, in_feats]
    feat = jax.random.normal(kf, (B, N, in_feats), jnp.float32)

    # random graph -> dense 0/1 adjacency, then row-normalize (mean aggregator)
    adj = (jax.random.uniform(ka, (B, N, N)) < 0.3).astype(jnp.float32)
    deg = jnp.clip(adj.sum(axis=-1, keepdims=True), 1.0, None)
    a_norm = adj / deg

    params = init_params(kp, in_feats, out_feats, num_layers, num_classes)
    prepared = prepare_params(params, in_feats)          # one-time pad/pack/bf16 cast
    a_norm_bf16 = a_norm.astype(jnp.bfloat16)            # one-time adjacency cast

    logits = graph_cls_graphsage_forward(a_norm_bf16, feat, prepared)
    logits = jax.block_until_ready(logits)

    ref = reference_forward(a_norm, feat, params)
    # bf16 MXU operands (incl. the row-normalized adjacency) vs the f32 reference:
    # tolerance loosened accordingly.
    np.testing.assert_allclose(np.asarray(logits), np.asarray(ref), rtol=5e-2, atol=5e-2)

    print("KERNEL_OK")
</pallas_src>

<mosaic_0001>
module attributes {stable_mosaic.version = 11 : i64} {
  func.func @fused_forward_kernel(%arg0: i32, %arg1: memref<1x16x16xbf16, #tpu.memory_space<vmem>>, %arg2: memref<1x16x32xf32, #tpu.memory_space<vmem>>, %arg3: memref<32x128xbf16, #tpu.memory_space<vmem>>, %arg4: memref<1x128xf32, #tpu.memory_space<vmem>>, %arg5: memref<128x128xbf16, #tpu.memory_space<vmem>>, %arg6: memref<128x128xbf16, #tpu.memory_space<vmem>>, %arg7: memref<1x128xf32, #tpu.memory_space<vmem>>, %arg8: memref<128x128xbf16, #tpu.memory_space<vmem>>, %arg9: memref<1x128xf32, #tpu.memory_space<vmem>>, %arg10: memref<128x128xbf16, #tpu.memory_space<vmem>>, %arg11: memref<128x128xbf16, #tpu.memory_space<vmem>>, %arg12: memref<1x128xf32, #tpu.memory_space<vmem>>, %arg13: memref<128x8xbf16, #tpu.memory_space<vmem>>, %arg14: memref<1x8xf32, #tpu.memory_space<vmem>>, %arg15: memref<1x1x8xf32, #tpu.memory_space<vmem>>) attributes {dimension_semantics = [#tpu.dimension_semantics<parallel>], iteration_bounds = array<i64: 2>, scalar_prefetch = 0 : i64, scratch_operands = 0 : i64, tpu.core_type = #tpu.core_type<tc>, window_params = [{transform_indices = @transform_0, window_bounds = array<i64: 1, 16, 16>}, {transform_indices = @transform_1, window_bounds = array<i64: 1, 16, 32>}, {pipeline_mode = #tpu.pipeline_mode<synchronous>, transform_indices = @transform_2, window_bounds = array<i64: 32, 128>}, {pipeline_mode = #tpu.pipeline_mode<synchronous>, transform_indices = @transform_3, window_bounds = array<i64: 1, 128>}, {pipeline_mode = #tpu.pipeline_mode<synchronous>, transform_indices = @transform_4, window_bounds = array<i64: 128, 128>}, {pipeline_mode = #tpu.pipeline_mode<synchronous>, transform_indices = @transform_5, window_bounds = array<i64: 128, 128>}, {pipeline_mode = #tpu.pipeline_mode<synchronous>, transform_indices = @transform_6, window_bounds = array<i64: 1, 128>}, {pipeline_mode = #tpu.pipeline_mode<synchronous>, transform_indices = @transform_7, window_bounds = array<i64: 128, 128>}, {pipeline_mode = #tpu.pipeline_mode<synchronous>, transform_indices = @transform_8, window_bounds = array<i64: 1, 128>}, {pipeline_mode = #tpu.pipeline_mode<synchronous>, transform_indices = @transform_9, window_bounds = array<i64: 128, 128>}, {pipeline_mode = #tpu.pipeline_mode<synchronous>, transform_indices = @transform_10, window_bounds = array<i64: 128, 128>}, {pipeline_mode = #tpu.pipeline_mode<synchronous>, transform_indices = @transform_11, window_bounds = array<i64: 1, 128>}, {pipeline_mode = #tpu.pipeline_mode<synchronous>, transform_indices = @transform_12, window_bounds = array<i64: 128, 8>}, {pipeline_mode = #tpu.pipeline_mode<synchronous>, transform_indices = @transform_13, window_bounds = array<i64: 1, 8>}, {transform_indices = @transform_14, window_bounds = array<i64: 1, 1, 8>}]} {
    %c0 = arith.constant 0 : index
    %c0_0 = arith.constant 0 : index
    %c0_1 = arith.constant 0 : index
    %0 = vector.load %arg2[%c0, %c0_0, %c0_1] : memref<1x16x32xf32, #tpu.memory_space<vmem>>, vector<1x16x32xf32>
    %1 = vector.shape_cast %0 : vector<1x16x32xf32> to vector<16x32xf32>
    %2 = arith.truncf %1 : vector<16x32xf32> to vector<16x32xbf16>
    %c0_2 = arith.constant 0 : index
    %c0_3 = arith.constant 0 : index
    %3 = vector.load %arg3[%c0_2, %c0_3] : memref<32x128xbf16, #tpu.memory_space<vmem>>, vector<32x128xbf16>
    %cst = arith.constant dense<0.000000e+00> : vector<16x128xf32>
    %4 = tpu.matmul %2, %3, %cst {dimension_numbers = #tpu.dot_dimension_numbers<[1], [0], [0], [1], [0, 0, 1, 1], [], []>} : vector<16x32xbf16>, vector<32x128xbf16>, vector<16x128xf32> -> vector<16x128xf32>
    %c0_4 = arith.constant 0 : index
    %c0_5 = arith.constant 0 : index
    %5 = vector.load %arg4[%c0_4, %c0_5] : memref<1x128xf32, #tpu.memory_space<vmem>>, vector<1x128xf32>
    %6 = vector.broadcast %5 : vector<1x128xf32> to vector<16x128xf32>
    %7 = arith.addf %4, %6 : vector<16x128xf32>
    %cst_6 = arith.constant 0.000000e+00 : f32
    %8 = vector.broadcast %cst_6 : f32 to vector<16x128xf32>
    %9 = arith.maximumf %7, %8 : vector<16x128xf32>
    %10 = arith.truncf %9 : vector<16x128xf32> to vector<16x128xbf16>
    %c0_7 = arith.constant 0 : index
    %c0_8 = arith.constant 0 : index
    %c0_9 = arith.constant 0 : index
    %11 = vector.load %arg1[%c0_7, %c0_8, %c0_9] : memref<1x16x16xbf16, #tpu.memory_space<vmem>>, vector<1x16x16xbf16>
    %12 = vector.shape_cast %11 : vector<1x16x16xbf16> to vector<16x16xbf16>
    %cst_10 = arith.constant dense<0.000000e+00> : vector<16x128xf32>
    %13 = tpu.matmul %12, %10, %cst_10 {dimension_numbers = #tpu.dot_dimension_numbers<[1], [0], [0], [1], [0, 0, 1, 1], [], []>} : vector<16x16xbf16>, vector<16x128xbf16>, vector<16x128xf32> -> vector<16x128xf32>
    %c0_11 = arith.constant 0 : index
    %c0_12 = arith.constant 0 : index
    %14 = vector.load %arg5[%c0_11, %c0_12] : memref<128x128xbf16, #tpu.memory_space<vmem>>, vector<128x128xbf16>
    %cst_13 = arith.constant dense<0.000000e+00> : vector<16x128xf32>
    %15 = tpu.matmul %10, %14, %cst_13 {dimension_numbers = #tpu.dot_dimension_numbers<[1], [0], [0], [1], [0, 0, 1, 1], [], []>} : vector<16x128xbf16>, vector<128x128xbf16>, vector<16x128xf32> -> vector<16x128xf32>
    %16 = arith.truncf %13 : vector<16x128xf32> to vector<16x128xbf16>
    %c0_14 = arith.constant 0 : index
    %c0_15 = arith.constant 0 : index
    %17 = vector.load %arg6[%c0_14, %c0_15] : memref<128x128xbf16, #tpu.memory_space<vmem>>, vector<128x128xbf16>
    %cst_16 = arith.constant dense<0.000000e+00> : vector<16x128xf32>
    %18 = tpu.matmul %16, %17, %cst_16 {dimension_numbers = #tpu.dot_dimension_numbers<[1], [0], [0], [1], [0, 0, 1, 1], [], []>} : vector<16x128xbf16>, vector<128x128xbf16>, vector<16x128xf32> -> vector<16x128xf32>
    %19 = arith.addf %15, %18 : vector<16x128xf32>
    %c0_17 = arith.constant 0 : index
    %c0_18 = arith.constant 0 : index
    %20 = vector.load %arg7[%c0_17, %c0_18] : memref<1x128xf32, #tpu.memory_space<vmem>>, vector<1x128xf32>
    %21 = vector.broadcast %20 : vector<1x128xf32> to vector<16x128xf32>
    %22 = arith.addf %19, %21 : vector<16x128xf32>
    %cst_19 = arith.constant 0.000000e+00 : f32
    %23 = vector.broadcast %cst_19 : f32 to vector<16x128xf32>
    %24 = arith.maximumf %22, %23 : vector<16x128xf32>
    %25 = arith.truncf %24 : vector<16x128xf32> to vector<16x128xbf16>
    %c0_20 = arith.constant 0 : index
    %c0_21 = arith.constant 0 : index
    %26 = vector.load %arg8[%c0_20, %c0_21] : memref<128x128xbf16, #tpu.memory_space<vmem>>, vector<128x128xbf16>
    %cst_22 = arith.constant dense<0.000000e+00> : vector<16x128xf32>
    %27 = tpu.matmul %25, %26, %cst_22 {dimension_numbers = #tpu.dot_dimension_numbers<[1], [0], [0], [1], [0, 0, 1, 1], [], []>} : vector<16x128xbf16>, vector<128x128xbf16>, vector<16x128xf32> -> vector<16x128xf32>
    %c0_23 = arith.constant 0 : index
    %c0_24 = arith.constant 0 : index
    %28 = vector.load %arg9[%c0_23, %c0_24] : memref<1x128xf32, #tpu.memory_space<vmem>>, vector<1x128xf32>
    %29 = vector.broadcast %28 : vector<1x128xf32> to vector<16x128xf32>
    %30 = arith.addf %27, %29 : vector<16x128xf32>
    %cst_25 = arith.constant 0.000000e+00 : f32
    %31 = vector.broadcast %cst_25 : f32 to vector<16x128xf32>
    %32 = arith.maximumf %30, %31 : vector<16x128xf32>
    %33 = arith.truncf %32 : vector<16x128xf32> to vector<16x128xbf16>
    %c0_26 = arith.constant 0 : index
    %c0_27 = arith.constant 0 : index
    %c0_28 = arith.constant 0 : index
    %34 = vector.load %arg1[%c0_26, %c0_27, %c0_28] : memref<1x16x16xbf16, #tpu.memory_space<vmem>>, vector<1x16x16xbf16>
    %35 = vector.shape_cast %34 : vector<1x16x16xbf16> to vector<16x16xbf16>
    %cst_29 = arith.constant dense<0.000000e+00> : vector<16x128xf32>
    %36 = tpu.matmul %35, %33, %cst_29 {dimension_numbers = #tpu.dot_dimension_numbers<[1], [0], [0], [1], [0, 0, 1, 1], [], []>} : vector<16x16xbf16>, vector<16x128xbf16>, vector<16x128xf32> -> vector<16x128xf32>
    %c0_30 = arith.constant 0 : index
    %c0_31 = arith.constant 0 : index
    %37 = vector.load %arg10[%c0_30, %c0_31] : memref<128x128xbf16, #tpu.memory_space<vmem>>, vector<128x128xbf16>
    %cst_32 = arith.constant dense<0.000000e+00> : vector<16x128xf32>
    %38 = tpu.matmul %33, %37, %cst_32 {dimension_numbers = #tpu.dot_dimension_numbers<[1], [0], [0], [1], [0, 0, 1, 1], [], []>} : vector<16x128xbf16>, vector<128x128xbf16>, vector<16x128xf32> -> vector<16x128xf32>
    %39 = arith.truncf %36 : vector<16x128xf32> to vector<16x128xbf16>
    %c0_33 = arith.constant 0 : index
    %c0_34 = arith.constant 0 : index
    %40 = vector.load %arg11[%c0_33, %c0_34] : memref<128x128xbf16, #tpu.memory_space<vmem>>, vector<128x128xbf16>
    %cst_35 = arith.constant dense<0.000000e+00> : vector<16x128xf32>
    %41 = tpu.matmul %39, %40, %cst_35 {dimension_numbers = #tpu.dot_dimension_numbers<[1], [0], [0], [1], [0, 0, 1, 1], [], []>} : vector<16x128xbf16>, vector<128x128xbf16>, vector<16x128xf32> -> vector<16x128xf32>
    %42 = arith.addf %38, %41 : vector<16x128xf32>
    %c0_36 = arith.constant 0 : index
    %c0_37 = arith.constant 0 : index
    %43 = vector.load %arg12[%c0_36, %c0_37] : memref<1x128xf32, #tpu.memory_space<vmem>>, vector<1x128xf32>
    %44 = vector.broadcast %43 : vector<1x128xf32> to vector<16x128xf32>
    %45 = arith.addf %42, %44 : vector<16x128xf32>
    %cst_38 = arith.constant 0.000000e+00 : f32
    %46 = vector.broadcast %cst_38 : f32 to vector<16x128xf32>
    %47 = arith.maximumf %45, %46 : vector<16x128xf32>
    %cst_39 = arith.constant dense<0.000000e+00> : vector<128xf32>
    %48 = vector.multi_reduction <add>, %47, %cst_39 [0] : vector<16x128xf32> to vector<128xf32>
    %49 = vector.shape_cast %48 : vector<128xf32> to vector<1x128xf32>
    %cst_40 = arith.constant 6.250000e-02 : f32
    %50 = vector.broadcast %cst_40 : f32 to vector<1x128xf32>
    %51 = arith.mulf %49, %50 : vector<1x128xf32>
    %52 = arith.truncf %51 : vector<1x128xf32> to vector<1x128xbf16>
    %c0_41 = arith.constant 0 : index
    %c0_42 = arith.constant 0 : index
    %53 = vector.load %arg13[%c0_41, %c0_42] : memref<128x8xbf16, #tpu.memory_space<vmem>>, vector<128x8xbf16>
    %cst_43 = arith.constant dense<0.000000e+00> : vector<1x8xf32>
    %54 = tpu.matmul %52, %53, %cst_43 {dimension_numbers = #tpu.dot_dimension_numbers<[1], [0], [0], [1], [0, 0, 1, 1], [], []>} : vector<1x128xbf16>, vector<128x8xbf16>, vector<1x8xf32> -> vector<1x8xf32>
    %c0_44 = arith.constant 0 : index
    %c0_45 = arith.constant 0 : index
    %55 = vector.load %arg14[%c0_44, %c0_45] : memref<1x8xf32, #tpu.memory_space<vmem>>, vector<1x8xf32>
    %56 = arith.addf %54, %55 : vector<1x8xf32>
    %c0_46 = arith.constant 0 : index
    %c0_47 = arith.constant 0 : index
    %c0_48 = arith.constant 0 : index
    %57 = vector.load %arg15[%c0_46, %c0_47, %c0_48] : memref<1x1x8xf32, #tpu.memory_space<vmem>>, vector<1x1x8xf32>
    %58 = vector.shape_cast %57 : vector<1x1x8xf32> to vector<1x8xf32>
    %59 = vector.shape_cast %56 : vector<1x8xf32> to vector<1x1x8xf32>
    tpu.vector_store %arg15[%c0_46, %c0_47, %c0_48], %59 {strides = array<i32>} : memref<1x1x8xf32, #tpu.memory_space<vmem>>, vector<1x1x8xf32>,
    return
  }
  func.func @transform_0(%arg0: i32) -> (i32, i32, i32) {
    %c0_i32 = arith.constant 0 : i32
    %c0_i32_0 = arith.constant 0 : i32
    %c0_i32_1 = arith.constant 0 : i32
    return %arg0, %c0_i32, %c0_i32_0 : i32, i32, i32
  }
  func.func @transform_1(%arg0: i32) -> (i32, i32, i32) {
    %c0_i32 = arith.constant 0 : i32
    %c0_i32_0 = arith.constant 0 : i32
    %c0_i32_1 = arith.constant 0 : i32
    return %arg0, %c0_i32, %c0_i32_0 : i32, i32, i32
  }
  func.func @transform_2(%arg0: i32) -> (i32, i32) {
    %c0_i32 = arith.constant 0 : i32
    %c0_i32_0 = arith.constant 0 : i32
    %c0_i32_1 = arith.constant 0 : i32
    return %c0_i32, %c0_i32_0 : i32, i32
  }
  func.func @transform_3(%arg0: i32) -> (i32, i32) {
    %c0_i32 = arith.constant 0 : i32
    %c0_i32_0 = arith.constant 0 : i32
    %c0_i32_1 = arith.constant 0 : i32
    return %c0_i32, %c0_i32_0 : i32, i32
  }
  func.func @transform_4(%arg0: i32) -> (i32, i32) {
    %c0_i32 = arith.constant 0 : i32
    %c0_i32_0 = arith.constant 0 : i32
    %c0_i32_1 = arith.constant 0 : i32
    return %c0_i32, %c0_i32_0 : i32, i32
  }
  func.func @transform_5(%arg0: i32) -> (i32, i32) {
    %c0_i32 = arith.constant 0 : i32
    %c0_i32_0 = arith.constant 0 : i32
    %c0_i32_1 = arith.constant 0 : i32
    return %c0_i32, %c0_i32_0 : i32, i32
  }
  func.func @transform_6(%arg0: i32) -> (i32, i32) {
    %c0_i32 = arith.constant 0 : i32
    %c0_i32_0 = arith.constant 0 : i32
    %c0_i32_1 = arith.constant 0 : i32
    return %c0_i32, %c0_i32_0 : i32, i32
  }
  func.func @transform_7(%arg0: i32) -> (i32, i32) {
    %c0_i32 = arith.constant 0 : i32
    %c0_i32_0 = arith.constant 0 : i32
    %c0_i32_1 = arith.constant 0 : i32
    return %c0_i32, %c0_i32_0 : i32, i32
  }
  func.func @transform_8(%arg0: i32) -> (i32, i32) {
    %c0_i32 = arith.constant 0 : i32
    %c0_i32_0 = arith.constant 0 : i32
    %c0_i32_1 = arith.constant 0 : i32
    return %c0_i32, %c0_i32_0 : i32, i32
  }
  func.func @transform_9(%arg0: i32) -> (i32, i32) {
    %c0_i32 = arith.constant 0 : i32
    %c0_i32_0 = arith.constant 0 : i32
    %c0_i32_1 = arith.constant 0 : i32
    return %c0_i32, %c0_i32_0 : i32, i32
  }
  func.func @transform_10(%arg0: i32) -> (i32, i32) {
    %c0_i32 = arith.constant 0 : i32
    %c0_i32_0 = arith.constant 0 : i32
    %c0_i32_1 = arith.constant 0 : i32
    return %c0_i32, %c0_i32_0 : i32, i32
  }
  func.func @transform_11(%arg0: i32) -> (i32, i32) {
    %c0_i32 = arith.constant 0 : i32
    %c0_i32_0 = arith.constant 0 : i32
    %c0_i32_1 = arith.constant 0 : i32
    return %c0_i32, %c0_i32_0 : i32, i32
  }
  func.func @transform_12(%arg0: i32) -> (i32, i32) {
    %c0_i32 = arith.constant 0 : i32
    %c0_i32_0 = arith.constant 0 : i32
    %c0_i32_1 = arith.constant 0 : i32
    return %c0_i32, %c0_i32_0 : i32, i32
  }
  func.func @transform_13(%arg0: i32) -> (i32, i32) {
    %c0_i32 = arith.constant 0 : i32
    %c0_i32_0 = arith.constant 0 : i32
    %c0_i32_1 = arith.constant 0 : i32
    return %c0_i32, %c0_i32_0 : i32, i32
  }
  func.func @transform_14(%arg0: i32) -> (i32, i32, i32) {
    %c0_i32 = arith.constant 0 : i32
    %c0_i32_0 = arith.constant 0 : i32
    %c0_i32_1 = arith.constant 0 : i32
    return %arg0, %c0_i32, %c0_i32_0 : i32, i32, i32
  }
}

</mosaic_0001>

<llo_original>
// kernel: tpu_custom_call.1
$region0: #{tpu_custom_call.1}
  #allocation0 [shape = 'u32[]', space=smem, size = 0x4, offset = 0x4, fixed_abs, tag = 'smem constant byte address 0x4 - core index']
  #allocation1 [shape = 'u32[144,128]{1,0:T(1,128)}', space=vmem, size = 0x12000, scoped, tag = 'internal scratch']
  %s0 = inlined_call_operand.vmem [shape: bf16[2,16,16], index: 0, kind: input, shape index: {}]
  %s1 = inlined_call_operand.hbm [shape: f32[2,16,32], index: 1, kind: input, shape index: {}]
  %s2 = inlined_call_operand.hbm [shape: bf16[32,128], index: 2, kind: input, shape index: {}]
  %s3 = inlined_call_operand.vmem [shape: f32[1,128], index: 3, kind: input, shape index: {}]
  %s4 = inlined_call_operand.vmem [shape: bf16[128,128], index: 4, kind: input, shape index: {}]
  %s5 = inlined_call_operand.hbm [shape: bf16[128,128], index: 5, kind: input, shape index: {}]
  %s6 = inlined_call_operand.vmem [shape: f32[1,128], index: 6, kind: input, shape index: {}]
  %s7 = inlined_call_operand.hbm [shape: bf16[128,128], index: 7, kind: input, shape index: {}]
  %s8 = inlined_call_operand.vmem [shape: f32[1,128], index: 8, kind: input, shape index: {}]
  %s9 = inlined_call_operand.hbm [shape: bf16[128,128], index: 9, kind: input, shape index: {}]
  %s10 = inlined_call_operand.hbm [shape: bf16[128,128], index: 10, kind: input, shape index: {}]
  %s11 = inlined_call_operand.vmem [shape: f32[1,128], index: 11, kind: input, shape index: {}]
  %s12 = inlined_call_operand.vmem [shape: bf16[128,8], index: 12, kind: input, shape index: {}]
  %s13 = inlined_call_operand.vmem [shape: f32[1,8], index: 13, kind: input, shape index: {}]
  %s14 = inlined_call_operand.hbm [shape: f32[2,1,8], index: 14, kind: output, shape index: {}]
  %s15 = sld [smem:[#allocation0]]
  $region113: #{tpu_custom_call.1} parent=0
    _
  %s17 = ssub.s32 1, %s15
  %s18 = scalar_select 0, %s17, %s15
  $region1: #{tpu_custom_call.1} parent=0
    #allocation2 [shape = 'u8[16384]{0}', space=vmem, size = 0x4000, scoped, tag = 'input window, operand 1']
    #allocation3 [shape = 's32[2]{0}', space=sflag, size = 0x8, scoped, tag = 'scoped memory for tpu_custom_call.1']
    #allocation4 [shape = 's32[2]{0}', space=sflag, size = 0x8, scoped, tag = 'scoped memory for tpu_custom_call.1']
    #allocation5 [shape = 'u8[8192]{0}', space=vmem, size = 0x2000, scoped, tag = 'input window, operand 2, single buffered']
    #allocation6 [shape = 's32[1]{0}', space=sflag, size = 0x4, scoped, tag = 'scoped memory for tpu_custom_call.1']
    #allocation7 [shape = 'u8[32768]{0}', space=vmem, size = 0x8000, scoped, tag = 'input window, operand 5, single buffered']
    #allocation8 [shape = 'u8[32768]{0}', space=vmem, size = 0x8000, scoped, tag = 'input window, operand 7, single buffered']
    #allocation9 [shape = 's32[1]{0}', space=sflag, size = 0x4, scoped, tag = 'scoped memory for tpu_custom_call.1']
    #allocation10 [shape = 'u8[32768]{0}', space=vmem, size = 0x8000, scoped, tag = 'input window, operand 9, single buffered']
    #allocation11 [shape = 'u8[32768]{0}', space=vmem, size = 0x8000, scoped, tag = 'input window, operand 10, single buffered']
    #allocation12 [shape = 's32[1]{0}', space=sflag, size = 0x4, scoped, tag = 'scoped memory for tpu_custom_call.1']
    #allocation13 [shape = 'u8[1024]{0}', space=vmem, size = 0x400, scoped, tag = 'output window, operand 0']
    %19 = vsyncpa [#allocation3], 0
    %s20 = scalar_lea.sflag [#allocation3], 1
    %21 = vsyncpa %s20, 0
    %22 = vsyncpa [#allocation6], 0
    %23 = vsyncpa [#allocation9], 0
    %24 = vsyncpa [#allocation12], 0
    %25 = vsyncpa [#allocation4], 0
    %s26 = scalar_lea.sflag [#allocation4], 1
    %27 = vsyncpa %s26, 0
    loop: start=0, step=1, limit=4
    $region2: #{tpu_custom_call.1} parent=1 // loop_pre_header
      _
    $region3: #{tpu_custom_call.1} parent=1 // loop_header
      %s29 = sphi 0, %s33
      %p30 = scmp.ge.s32.totalorder %s29, 4
      %s39 = sphi 0, %s41
      %s42 = sphi 0, %s39
      %s43 = sphi 0, %s42
      %s59 = sphi 0, %s43
      %s65 = sphi 0, %s67
      %s68 = sphi 0, %s65
      %s69 = sphi 0, %s68
      %s85 = sphi 0, %s69
      %s89 = sphi 0, %s89
      %s91 = sphi 0, %s89
      %s92 = sphi 0, %s91
      %s106 = sphi 0, %s92
      %s110 = sphi 0, %s110
      %s112 = sphi 0, %s110
      %s113 = sphi 0, %s112
      %s127 = sphi 0, %s113
      %s131 = sphi 0, %s131
      %s133 = sphi 0, %s131
      %s134 = sphi 0, %s133
      %s148 = sphi 0, %s134
      %s152 = sphi 0, %s152
      %s154 = sphi 0, %s152
      %s155 = sphi 0, %s154
      %s169 = sphi 0, %s155
      %s173 = sphi 0, %s173
      %s175 = sphi 0, %s173
      %s176 = sphi 0, %s175
      %s190 = sphi 0, %s176
      %s194 = sphi 0, %s194
      %s196 = sphi 0, %s194
      %s197 = sphi 0, %s196
      %s211 = sphi 0, %s197
      %s215 = sphi 0, %s215
      %s217 = sphi 0, %s215
      %s218 = sphi 0, %s217
      %s232 = sphi 0, %s218
      %s236 = sphi 0, %s236
      %s238 = sphi 0, %s236
      %s239 = sphi 0, %s238
      %s253 = sphi 0, %s239
      %s257 = sphi 0, %s257
      %s259 = sphi 0, %s257
      %s260 = sphi 0, %s259
      %s274 = sphi 0, %s260
      %s278 = sphi 0, %s278
      %s280 = sphi 0, %s278
      %s281 = sphi 0, %s280
      %s295 = sphi 0, %s281
      %s299 = sphi 0, %s299
      %s301 = sphi 0, %s299
      %s302 = sphi 0, %s301
      %s316 = sphi 0, %s302
      %s320 = sphi 0, %s320
      %s322 = sphi 0, %s320
      %s323 = sphi 0, %s322
      %s337 = sphi 0, %s323
      %s343 = sphi 0, %s345
      %s346 = sphi 0, %s343
      %s347 = sphi 0, %s346
      %s363 = sphi 0, %s347
    $region4: #{tpu_custom_call.1} parent=1 // loop_header_branch
      %32 = sbr.rel (%p30) target = $region8
    $region5: #{tpu_custom_call.1} parent=1 // loop_body
      %s34 = ssub.s32 %s29, 1
      %s35 = ssub.s32 %s29, 2
      %s36 = sadd.s32 %s29, 1
      %s37 = ssub.s32 %s29, %s36
      %p38 = scmp.eq.s32.totalorder %s37, 0
      %s40 = sadd.s32 %s39, 1
      %s41 = scalar_select %p38, %s39, %s40
      %p44 = pneg %p38
      %p45 = scmp.eq.s32.totalorder %s29, 1
      %p46 = por %p44, %p45
      %p47 = scmp.ne.s32.totalorder %s39, %s42
      %p48 = scmp.eq.s32.totalorder %s29, 0
      %p49 = por %p47, %p48
      %p50 = scmp.ne.s32.totalorder %s39, %s42
      %p51 = scmp.eq.s32.totalorder %s34, 1
      %p52 = por %p50, %p51
      %p53 = scmp.ne.s32.totalorder %s42, %s43
      %p54 = scmp.eq.s32.totalorder %s34, 0
      %p55 = por %p53, %p54
      %p56 = scmp.ne.s32.totalorder %s42, %s43
      %p57 = scmp.eq.s32.totalorder %s35, 1
      %p58 = por %p56, %p57
      %p60 = scmp.ne.s32.totalorder %s43, %s59
      %p61 = scmp.eq.s32.totalorder %s35, 0
      %p62 = por %p60, %p61
      %s63 = ssub.s32 %s29, %s36
      %p64 = scmp.eq.s32.totalorder %s63, 0
      %s66 = sadd.s32 %s65, 1
      %s67 = scalar_select %p64, %s65, %s66
      %p70 = pneg %p64
      %p71 = scmp.eq.s32.totalorder %s29, 1
      %p72 = por %p70, %p71
      %p73 = scmp.ne.s32.totalorder %s65, %s68
      %p74 = scmp.eq.s32.totalorder %s29, 0
      %p75 = por %p73, %p74
      %p76 = scmp.ne.s32.totalorder %s65, %s68
      %p77 = scmp.eq.s32.totalorder %s34, 1
      %p78 = por %p76, %p77
      %p79 = scmp.ne.s32.totalorder %s68, %s69
      %p80 = scmp.eq.s32.totalorder %s34, 0
      %p81 = por %p79, %p80
      %p82 = scmp.ne.s32.totalorder %s68, %s69
      %p83 = scmp.eq.s32.totalorder %s35, 1
      %p84 = por %p82, %p83
      %p86 = scmp.ne.s32.totalorder %s69, %s85
      %p87 = scmp.eq.s32.totalorder %s35, 0
      %p88 = por %p86, %p87
      %s90 = sadd.s32 %s89, 1
      %p93 = scmp.eq.s32.totalorder %s29, 1
      %p94 = scmp.ne.s32.totalorder %s89, %s91
      %p95 = scmp.eq.s32.totalorder %s29, 0
      %p96 = por %p94, %p95
      %p97 = scmp.ne.s32.totalorder %s89, %s91
      %p98 = scmp.eq.s32.totalorder %s34, 1
      %p99 = por %p97, %p98
      %p100 = scmp.ne.s32.totalorder %s91, %s92
      %p101 = scmp.eq.s32.totalorder %s34, 0
      %p102 = por %p100, %p101
      %p103 = scmp.ne.s32.totalorder %s91, %s92
      %p104 = scmp.eq.s32.totalorder %s35, 1
      %p105 = por %p103, %p104
      %p107 = scmp.ne.s32.totalorder %s92, %s106
      %p108 = scmp.eq.s32.totalorder %s35, 0
      %p109 = por %p107, %p108
      %s111 = sadd.s32 %s110, 1
      %p114 = scmp.eq.s32.totalorder %s29, 1
      %p115 = scmp.ne.s32.totalorder %s110, %s112
      %p116 = scmp.eq.s32.totalorder %s29, 0
      %p117 = por %p115, %p116
      %p118 = scmp.ne.s32.totalorder %s110, %s112
      %p119 = scmp.eq.s32.totalorder %s34, 1
      %p120 = por %p118, %p119
      %p121 = scmp.ne.s32.totalorder %s112, %s113
      %p122 = scmp.eq.s32.totalorder %s34, 0
      %p123 = por %p121, %p122
      %p124 = scmp.ne.s32.totalorder %s112, %s113
      %p125 = scmp.eq.s32.totalorder %s35, 1
      %p126 = por %p124, %p125
      %p128 = scmp.ne.s32.totalorder %s113, %s127
      %p129 = scmp.eq.s32.totalorder %s35, 0
      %p130 = por %p128, %p129
      %s132 = sadd.s32 %s131, 1
      %p135 = scmp.eq.s32.totalorder %s29, 1
      %p136 = scmp.ne.s32.totalorder %s131, %s133
      %p137 = scmp.eq.s32.totalorder %s29, 0
      %p138 = por %p136, %p137
      %p139 = scmp.ne.s32.totalorder %s131, %s133
      %p140 = scmp.eq.s32.totalorder %s34, 1
      %p141 = por %p139, %p140
      %p142 = scmp.ne.s32.totalorder %s133, %s134
      %p143 = scmp.eq.s32.totalorder %s34, 0
      %p144 = por %p142, %p143
      %p145 = scmp.ne.s32.totalorder %s133, %s134
      %p146 = scmp.eq.s32.totalorder %s35, 1
      %p147 = por %p145, %p146
      %p149 = scmp.ne.s32.totalorder %s134, %s148
      %p150 = scmp.eq.s32.totalorder %s35, 0
      %p151 = por %p149, %p150
      %s153 = sadd.s32 %s152, 1
      %p156 = scmp.eq.s32.totalorder %s29, 1
      %p157 = scmp.ne.s32.totalorder %s152, %s154
      %p158 = scmp.eq.s32.totalorder %s29, 0
      %p159 = por %p157, %p158
      %p160 = scmp.ne.s32.totalorder %s152, %s154
      %p161 = scmp.eq.s32.totalorder %s34, 1
      %p162 = por %p160, %p161
      %p163 = scmp.ne.s32.totalorder %s154, %s155
      %p164 = scmp.eq.s32.totalorder %s34, 0
      %p165 = por %p163, %p164
      %p166 = scmp.ne.s32.totalorder %s154, %s155
      %p167 = scmp.eq.s32.totalorder %s35, 1
      %p168 = por %p166, %p167
      %p170 = scmp.ne.s32.totalorder %s155, %s169
      %p171 = scmp.eq.s32.totalorder %s35, 0
      %p172 = por %p170, %p171
      %s174 = sadd.s32 %s173, 1
      %p177 = scmp.eq.s32.totalorder %s29, 1
      %p178 = scmp.ne.s32.totalorder %s173, %s175
      %p179 = scmp.eq.s32.totalorder %s29, 0
      %p180 = por %p178, %p179
      %p181 = scmp.ne.s32.totalorder %s173, %s175
      %p182 = scmp.eq.s32.totalorder %s34, 1
      %p183 = por %p181, %p182
      %p184 = scmp.ne.s32.totalorder %s175, %s176
      %p185 = scmp.eq.s32.totalorder %s34, 0
      %p186 = por %p184, %p185
      %p187 = scmp.ne.s32.totalorder %s175, %s176
      %p188 = scmp.eq.s32.totalorder %s35, 1
      %p189 = por %p187, %p188
      %p191 = scmp.ne.s32.totalorder %s176, %s190
      %p192 = scmp.eq.s32.totalorder %s35, 0
      %p193 = por %p191, %p192
      %s195 = sadd.s32 %s194, 1
      %p198 = scmp.eq.s32.totalorder %s29, 1
      %p199 = scmp.ne.s32.totalorder %s194, %s196
      %p200 = scmp.eq.s32.totalorder %s29, 0
      %p201 = por %p199, %p200
      %p202 = scmp.ne.s32.totalorder %s194, %s196
      %p203 = scmp.eq.s32.totalorder %s34, 1
      %p204 = por %p202, %p203
      %p205 = scmp.ne.s32.totalorder %s196, %s197
      %p206 = scmp.eq.s32.totalorder %s34, 0
      %p207 = por %p205, %p206
      %p208 = scmp.ne.s32.totalorder %s196, %s197
      %p209 = scmp.eq.s32.totalorder %s35, 1
      %p210 = por %p208, %p209
      %p212 = scmp.ne.s32.totalorder %s197, %s211
      %p213 = scmp.eq.s32.totalorder %s35, 0
      %p214 = por %p212, %p213
      %s216 = sadd.s32 %s215, 1
      %p219 = scmp.eq.s32.totalorder %s29, 1
      %p220 = scmp.ne.s32.totalorder %s215, %s217
      %p221 = scmp.eq.s32.totalorder %s29, 0
      %p222 = por %p220, %p221
      %p223 = scmp.ne.s32.totalorder %s215, %s217
      %p224 = scmp.eq.s32.totalorder %s34, 1
      %p225 = por %p223, %p224
      %p226 = scmp.ne.s32.totalorder %s217, %s218
      %p227 = scmp.eq.s32.totalorder %s34, 0
      %p228 = por %p226, %p227
      %p229 = scmp.ne.s32.totalorder %s217, %s218
      %p230 = scmp.eq.s32.totalorder %s35, 1
      %p231 = por %p229, %p230
      %p233 = scmp.ne.s32.totalorder %s218, %s232
      %p234 = scmp.eq.s32.totalorder %s35, 0
      %p235 = por %p233, %p234
      %s237 = sadd.s32 %s236, 1
      %p240 = scmp.eq.s32.totalorder %s29, 1
      %p241 = scmp.ne.s32.totalorder %s236, %s238
      %p242 = scmp.eq.s32.totalorder %s29, 0
      %p243 = por %p241, %p242
      %p244 = scmp.ne.s32.totalorder %s236, %s238
      %p245 = scmp.eq.s32.totalorder %s34, 1
      %p246 = por %p244, %p245
      %p247 = scmp.ne.s32.totalorder %s238, %s239
      %p248 = scmp.eq.s32.totalorder %s34, 0
      %p249 = por %p247, %p248
      %p250 = scmp.ne.s32.totalorder %s238, %s239
      %p251 = scmp.eq.s32.totalorder %s35, 1
      %p252 = por %p250, %p251
      %p254 = scmp.ne.s32.totalorder %s239, %s253
      %p255 = scmp.eq.s32.totalorder %s35, 0
      %p256 = por %p254, %p255
      %s258 = sadd.s32 %s257, 1
      %p261 = scmp.eq.s32.totalorder %s29, 1
      %p262 = scmp.ne.s32.totalorder %s257, %s259
      %p263 = scmp.eq.s32.totalorder %s29, 0
      %p264 = por %p262, %p263
      %p265 = scmp.ne.s32.totalorder %s257, %s259
      %p266 = scmp.eq.s32.totalorder %s34, 1
      %p267 = por %p265, %p266
      %p268 = scmp.ne.s32.totalorder %s259, %s260
      %p269 = scmp.eq.s32.totalorder %s34, 0
      %p270 = por %p268, %p269
      %p271 = scmp.ne.s32.totalorder %s259, %s260
      %p272 = scmp.eq.s32.totalorder %s35, 1
      %p273 = por %p271, %p272
      %p275 = scmp.ne.s32.totalorder %s260, %s274
      %p276 = scmp.eq.s32.totalorder %s35, 0
      %p277 = por %p275, %p276
      %s279 = sadd.s32 %s278, 1
      %p282 = scmp.eq.s32.totalorder %s29, 1
      %p283 = scmp.ne.s32.totalorder %s278, %s280
      %p284 = scmp.eq.s32.totalorder %s29, 0
      %p285 = por %p283, %p284
      %p286 = scmp.ne.s32.totalorder %s278, %s280
      %p287 = scmp.eq.s32.totalorder %s34, 1
      %p288 = por %p286, %p287
      %p289 = scmp.ne.s32.totalorder %s280, %s281
      %p290 = scmp.eq.s32.totalorder %s34, 0
      %p291 = por %p289, %p290
      %p292 = scmp.ne.s32.totalorder %s280, %s281
      %p293 = scmp.eq.s32.totalorder %s35, 1
      %p294 = por %p292, %p293
      %p296 = scmp.ne.s32.totalorder %s281, %s295
      %p297 = scmp.eq.s32.totalorder %s35, 0
      %p298 = por %p296, %p297
      %s300 = sadd.s32 %s299, 1
      %p303 = scmp.eq.s32.totalorder %s29, 1
      %p304 = scmp.ne.s32.totalorder %s299, %s301
      %p305 = scmp.eq.s32.totalorder %s29, 0
      %p306 = por %p304, %p305
      %p307 = scmp.ne.s32.totalorder %s299, %s301
      %p308 = scmp.eq.s32.totalorder %s34, 1
      %p309 = por %p307, %p308
      %p310 = scmp.ne.s32.totalorder %s301, %s302
      %p311 = scmp.eq.s32.totalorder %s34, 0
      %p312 = por %p310, %p311
      %p313 = scmp.ne.s32.totalorder %s301, %s302
      %p314 = scmp.eq.s32.totalorder %s35, 1
      %p315 = por %p313, %p314
      %p317 = scmp.ne.s32.totalorder %s302, %s316
      %p318 = scmp.eq.s32.totalorder %s35, 0
      %p319 = por %p317, %p318
      %s321 = sadd.s32 %s320, 1
      %p324 = scmp.eq.s32.totalorder %s29, 1
      %p325 = scmp.ne.s32.totalorder %s320, %s322
      %p326 = scmp.eq.s32.totalorder %s29, 0
      %p327 = por %p325, %p326
      %p328 = scmp.ne.s32.totalorder %s320, %s322
      %p329 = scmp.eq.s32.totalorder %s34, 1
      %p330 = por %p328, %p329
      %p331 = scmp.ne.s32.totalorder %s322, %s323
      %p332 = scmp.eq.s32.totalorder %s34, 0
      %p333 = por %p331, %p332
      %p334 = scmp.ne.s32.totalorder %s322, %s323
      %p335 = scmp.eq.s32.totalorder %s35, 1
      %p336 = por %p334, %p335
      %p338 = scmp.ne.s32.totalorder %s323, %s337
      %p339 = scmp.eq.s32.totalorder %s35, 0
      %p340 = por %p338, %p339
      %s341 = ssub.s32 %s29, %s36
      %p342 = scmp.eq.s32.totalorder %s341, 0
      %s344 = sadd.s32 %s343, 1
      %s345 = scalar_select %p342, %s343, %s344
      %p348 = pneg %p342
      %p349 = scmp.eq.s32.totalorder %s29, 1
      %p350 = por %p348, %p349
      %p351 = scmp.ne.s32.totalorder %s343, %s346
      %p352 = scmp.eq.s32.totalorder %s29, 0
      %p353 = por %p351, %p352
      %p354 = scmp.ne.s32.totalorder %s343, %s346
      %p355 = scmp.eq.s32.totalorder %s34, 1
      %p356 = por %p354, %p355
      %p357 = scmp.ne.s32.totalorder %s346, %s347
      %p358 = scmp.eq.s32.totalorder %s34, 0
      %p359 = por %p357, %p358
      %p360 = scmp.ne.s32.totalorder %s346, %s347
      %p361 = scmp.eq.s32.totalorder %s35, 1
      %p362 = por %p360, %p361
      %p364 = scmp.ne.s32.totalorder %s347, %s363
      %p365 = scmp.eq.s32.totalorder %s35, 0
      %p366 = por %p364, %p365
      %p367 = scmp.le.s32.totalorder 1, %s29
      %p368 = scmp.lt.s32.totalorder %s29, 3
      %p369 = pnand %p367, %p368
      %p370 = pneg %p369
      // Predicated region
      $region9: #{tpu_custom_call.1} parent=5 // pred_check
        _
      $region10: #{tpu_custom_call.1} parent=5 // pred_check_branch
        %372 = sbr.rel (%p369) target = $region12
      $region11: #{tpu_custom_call.1} parent=5 // pred_region
        %s373 = ssub.s32 %s29, 1
        // Predicated region
        $region13: #{tpu_custom_call.1} parent=11 // pred_check
          %p374 = pneg %p102
        $region14: #{tpu_custom_call.1} parent=11 // pred_check_branch
          %376 = sbr.rel (%p374) target = $region16
        $region15: #{tpu_custom_call.1} parent=11 // pred_region
          %s378 = ssub.s32 256, 256
          %379 = vsyncadd [#allocation6], %s378
          %s380 = sshll.u32 [#allocation5], 4
          %s381 = int_to_ptr.vmem [resolvable:$true] %s380
          %386 = dma.hbm_to_vmem [thread:$0]  %s2, 256, %s381, [#allocation6], 64, 64, 4
        $region16: #{tpu_custom_call.1} parent=11 // pred_fallthru
          _
        // Predicated region
        $region17: #{tpu_custom_call.1} parent=11 // pred_check
          %p387 = pneg %p123
        $region18: #{tpu_custom_call.1} parent=11 // pred_check_branch
          %389 = sbr.rel (%p387) target = $region20
        $region19: #{tpu_custom_call.1} parent=11 // pred_region
          _
        $region20: #{tpu_custom_call.1} parent=11 // pred_fallthru
          _
        // Predicated region
        $region21: #{tpu_custom_call.1} parent=11 // pred_check
          %p390 = pneg %p144
        $region22: #{tpu_custom_call.1} parent=11 // pred_check_branch
          %392 = sbr.rel (%p390) target = $region24
        $region23: #{tpu_custom_call.1} parent=11 // pred_region
          _
        $region24: #{tpu_custom_call.1} parent=11 // pred_fallthru
          _
        // Predicated region
        $region25: #{tpu_custom_call.1} parent=11 // pred_check
          %p393 = pneg %p165
        $region26: #{tpu_custom_call.1} parent=11 // pred_check_branch
          %395 = sbr.rel (%p393) target = $region28
        $region27: #{tpu_custom_call.1} parent=11 // pred_region
          %s397 = ssub.s32 1024, 1024
          %398 = vsyncadd [#allocation6], %s397
          %s399 = sshll.u32 [#allocation7], 4
          %s400 = int_to_ptr.vmem [resolvable:$true] %s399
          %405 = dma.hbm_to_vmem [thread:$0]  %s5, 1024, %s400, [#allocation6], 64, 64, 4
        $region28: #{tpu_custom_call.1} parent=11 // pred_fallthru
          _
        // Predicated region
        $region29: #{tpu_custom_call.1} parent=11 // pred_check
          %p406 = pneg %p186
        $region30: #{tpu_custom_call.1} parent=11 // pred_check_branch
          %408 = sbr.rel (%p406) target = $region32
        $region31: #{tpu_custom_call.1} parent=11 // pred_region
          _
        $region32: #{tpu_custom_call.1} parent=11 // pred_fallthru
          _
        // Predicated region
        $region33: #{tpu_custom_call.1} parent=11 // pred_check
          %p409 = pneg %p207
        $region34: #{tpu_custom_call.1} parent=11 // pred_check_branch
          %411 = sbr.rel (%p409) target = $region36
        $region35: #{tpu_custom_call.1} parent=11 // pred_region
          %s413 = ssub.s32 1024, 1024
          %414 = vsyncadd [#allocation9], %s413
          %s415 = sshll.u32 [#allocation8], 4
          %s416 = int_to_ptr.vmem [resolvable:$true] %s415
          %421 = dma.hbm_to_vmem [thread:$0]  %s7, 1024, %s416, [#allocation9], 64, 64, 4
        $region36: #{tpu_custom_call.1} parent=11 // pred_fallthru
          _
        // Predicated region
        $region37: #{tpu_custom_call.1} parent=11 // pred_check
          %p422 = pneg %p228
        $region38: #{tpu_custom_call.1} parent=11 // pred_check_branch
          %424 = sbr.rel (%p422) target = $region40
        $region39: #{tpu_custom_call.1} parent=11 // pred_region
          _
        $region40: #{tpu_custom_call.1} parent=11 // pred_fallthru
          _
        // Predicated region
        $region41: #{tpu_custom_call.1} parent=11 // pred_check
          %p425 = pneg %p249
        $region42: #{tpu_custom_call.1} parent=11 // pred_check_branch
          %427 = sbr.rel (%p425) target = $region44
        $region43: #{tpu_custom_call.1} parent=11 // pred_region
          %s429 = ssub.s32 1024, 1024
          %430 = vsyncadd [#allocation9], %s429
          %s431 = sshll.u32 [#allocation10], 4
          %s432 = int_to_ptr.vmem [resolvable:$true] %s431
          %437 = dma.hbm_to_vmem [thread:$0]  %s9, 1024, %s432, [#allocation9], 64, 64, 4
        $region44: #{tpu_custom_call.1} parent=11 // pred_fallthru
          _
        // Predicated region
        $region45: #{tpu_custom_call.1} parent=11 // pred_check
          %p438 = pneg %p270
        $region46: #{tpu_custom_call.1} parent=11 // pred_check_branch
          %440 = sbr.rel (%p438) target = $region48
        $region47: #{tpu_custom_call.1} parent=11 // pred_region
          %s442 = ssub.s32 1024, 1024
          %443 = vsyncadd [#allocation12], %s442
          %s444 = sshll.u32 [#allocation11], 4
          %s445 = int_to_ptr.vmem [resolvable:$true] %s444
          %450 = dma.hbm_to_vmem [thread:$0]  %s10, 1024, %s445, [#allocation12], 64, 64, 4
        $region48: #{tpu_custom_call.1} parent=11 // pred_fallthru
          _
        // Predicated region
        $region49: #{tpu_custom_call.1} parent=11 // pred_check
          %p451 = pneg %p291
        $region50: #{tpu_custom_call.1} parent=11 // pred_check_branch
          %453 = sbr.rel (%p451) target = $region52
        $region51: #{tpu_custom_call.1} parent=11 // pred_region
          _
        $region52: #{tpu_custom_call.1} parent=11 // pred_fallthru
          _
        // Predicated region
        $region53: #{tpu_custom_call.1} parent=11 // pred_check
          %p454 = pneg %p312
        $region54: #{tpu_custom_call.1} parent=11 // pred_check_branch
          %456 = sbr.rel (%p454) target = $region56
        $region55: #{tpu_custom_call.1} parent=11 // pred_region
          _
        $region56: #{tpu_custom_call.1} parent=11 // pred_fallthru
          _
        // Predicated region
        $region57: #{tpu_custom_call.1} parent=11 // pred_check
          %p457 = pneg %p333
        $region58: #{tpu_custom_call.1} parent=11 // pred_check_branch
          %459 = sbr.rel (%p457) target = $region60
        $region59: #{tpu_custom_call.1} parent=11 // pred_region
          _
        $region60: #{tpu_custom_call.1} parent=11 // pred_fallthru
          _
      $region12: #{tpu_custom_call.1} parent=5 // pred_fallthru
        _
      %p460 = scmp.lt.s32.totalorder %s29, 2
      // Predicated region
      $region61: #{tpu_custom_call.1} parent=5 // pred_check
        %p461 = pneg %p460
      $region62: #{tpu_custom_call.1} parent=5 // pred_check_branch
        %463 = sbr.rel (%p461) target = $region64
      $region63: #{tpu_custom_call.1} parent=5 // pred_region
        // Predicated region
        $region65: #{tpu_custom_call.1} parent=63 // pred_check
          %p464 = pneg %p49
        $region66: #{tpu_custom_call.1} parent=63 // pred_check_branch
          %466 = sbr.rel (%p464) target = $region68
        $region67: #{tpu_custom_call.1} parent=63 // pred_region
          %p467 = scmp.lt.s32.totalorder %s29, 1
          %s468 = scalar_select %p467, %s29, 1
          %s469 = smul.addr %s468, 2
          %s470 = smul.addr %s469, 4
          %s471 = scalar_lea.vmem %s0, %s470
        $region68: #{tpu_custom_call.1} parent=63 // pred_fallthru
          _
        // Predicated region
        $region69: #{tpu_custom_call.1} parent=63 // pred_check
          %p472 = pneg %p75
        $region70: #{tpu_custom_call.1} parent=63 // pred_check_branch
          %474 = sbr.rel (%p472) target = $region72
        $region71: #{tpu_custom_call.1} parent=63 // pred_region
          %s475 = sand.u32 %s65, 1
          %s476 = scalar_lea.sflag [#allocation3], %s475
          %s477 = sand.u32 %s65, 1
          %s478 = smul.addr %s477, 16
          %s479 = scalar_lea.vmem [#allocation2], %s478
          %s481 = ssub.s32 256, 256
          %482 = vsyncadd %s476, %s481
          %s483 = smul.addr %s29, 2
          %s484 = smul.addr %s483, 128
          %s485 = scalar_lea.hbm %s1, %s484
          %s486 = sshll.u32 %s479, 4
          %s487 = int_to_ptr.vmem [resolvable:$true] %s486
          %492 = dma.hbm_to_vmem [thread:$0]  %s485, 256, %s487, %s476, 128, 128, 8
        $region72: #{tpu_custom_call.1} parent=63 // pred_fallthru
          _
      $region64: #{tpu_custom_call.1} parent=5 // pred_fallthru
        _
      %p493 = scmp.le.s32.totalorder 1, %s29
      %p494 = scmp.lt.s32.totalorder %s29, 3
      %p495 = pnand %p493, %p494
      %p496 = pneg %p495
      // Predicated region
      $region73: #{tpu_custom_call.1} parent=5 // pred_check
        _
      $region74: #{tpu_custom_call.1} parent=5 // pred_check_branch
        %498 = sbr.rel (%p495) target = $region76
      $region75: #{tpu_custom_call.1} parent=5 // pred_region
        %s499 = ssub.s32 %s29, 1
        %s500 = sand.u32 %s68, 1
        %s501 = scalar_lea.sflag [#allocation3], %s500
        %s502 = sand.u32 %s68, 1
        %s503 = smul.addr %s502, 16
        %s504 = scalar_lea.vmem [#allocation2], %s503
        // Predicated region
        $region77: #{tpu_custom_call.1} parent=75 // pred_check
          %p505 = pneg %p81
        $region78: #{tpu_custom_call.1} parent=75 // pred_check_branch
          %507 = sbr.rel (%p505) target = $region80
        $region79: #{tpu_custom_call.1} parent=75 // pred_region
          %508 = dma.done %s501, 256
        $region80: #{tpu_custom_call.1} parent=75 // pred_fallthru
          _
        // Predicated region
        $region81: #{tpu_custom_call.1} parent=75 // pred_check
          %p509 = pneg %p102
        $region82: #{tpu_custom_call.1} parent=75 // pred_check_branch
          %511 = sbr.rel (%p509) target = $region84
        $region83: #{tpu_custom_call.1} parent=75 // pred_region
          %512 = dma.done [#allocation6], 256
        $region84: #{tpu_custom_call.1} parent=75 // pred_fallthru
          _
        // Predicated region
        $region85: #{tpu_custom_call.1} parent=75 // pred_check
          %p513 = pneg %p165
        $region86: #{tpu_custom_call.1} parent=75 // pred_check_branch
          %515 = sbr.rel (%p513) target = $region88
        $region87: #{tpu_custom_call.1} parent=75 // pred_region
          %516 = dma.done [#allocation6], 1024
        $region88: #{tpu_custom_call.1} parent=75 // pred_fallthru
          _
        // Predicated region
        $region89: #{tpu_custom_call.1} parent=75 // pred_check
          %p517 = pneg %p207
        $region90: #{tpu_custom_call.1} parent=75 // pred_check_branch
          %519 = sbr.rel (%p517) target = $region92
        $region91: #{tpu_custom_call.1} parent=75 // pred_region
          %520 = dma.done [#allocation9], 1024
        $region92: #{tpu_custom_call.1} parent=75 // pred_fallthru
          _
        // Predicated region
        $region93: #{tpu_custom_call.1} parent=75 // pred_check
          %p521 = pneg %p249
        $region94: #{tpu_custom_call.1} parent=75 // pred_check_branch
          %523 = sbr.rel (%p521) target = $region96
        $region95: #{tpu_custom_call.1} parent=75 // pred_region
          %524 = dma.done [#allocation9], 1024
        $region96: #{tpu_custom_call.1} parent=75 // pred_fallthru
          _
        // Predicated region
        $region97: #{tpu_custom_call.1} parent=75 // pred_check
          %p525 = pneg %p270
        $region98: #{tpu_custom_call.1} parent=75 // pred_check_branch
          %527 = sbr.rel (%p525) target = $region100
        $region99: #{tpu_custom_call.1} parent=75 // pred_region
          %528 = dma.done [#allocation12], 1024
        $region100: #{tpu_custom_call.1} parent=75 // pred_fallthru
          _
        %p529 = scmp.lt.s32.totalorder %s34, 1
        %s530 = scalar_select %p529, %s34, 1
        %s531 = smul.addr %s530, 2
        %s532 = smul.addr %s531, 4
        %s533 = scalar_lea.vmem %s0, %s532
        %p534 = pneg %p55
        %p535 = pneg %p52
        %s536 = sand.u32 %s68, 1
        %s537 = scalar_lea.sflag [#allocation3], %s536
        %s538 = sand.u32 %s68, 1
        %s539 = smul.addr %s538, 16
        %s540 = scalar_lea.vmem [#allocation2], %s539
        %p541 = pneg %p81
        %p542 = pneg %p78
        %p543 = pneg %p102
        %p544 = pneg %p99
        %p545 = pneg %p123
        %p546 = pneg %p120
        %p547 = pneg %p144
        %p548 = pneg %p141
        %p549 = pneg %p165
        %p550 = pneg %p162
        %p551 = pneg %p186
        %p552 = pneg %p183
        %p553 = pneg %p207
        %p554 = pneg %p204
        %p555 = pneg %p228
        %p556 = pneg %p225
        %p557 = pneg %p249
        %p558 = pneg %p246
        %p559 = pneg %p270
        %p560 = pneg %p267
        %p561 = pneg %p291
        %p562 = pneg %p288
        %p563 = pneg %p312
        %p564 = pneg %p309
        %p565 = pneg %p333
        %p566 = pneg %p330
        %p567 = pneg %p359
        %p568 = pneg %p356
        %s569 = sand.u32 %s346, 1
        %s570 = scalar_lea.sflag [#allocation4], %s569
        %s571 = sand.u32 %s346, 1
        %s572 = scalar_lea.vmem [#allocation13], %s571
        %p573 = scmp.lt.s32.totalorder %s34, 1
        %s574 = scalar_select %p573, %s34, 1
        %s575 = smul.addr %s574, 2
        %s576 = smul.addr %s575, 4
        %s577 = scalar_lea.vmem %s0, %s576
        %v579 = vld [vmem:[%s504] sm:$0xff]
        %v580 = vld [vmem:[%s504 + $0x8] sm:$0xff]
        %v581 = vpack.c.bf16 %v580, %v579
        %v582 = vld [vmem:[#allocation5] sm:$0xf]
        %v583 = vld [vmem:[#allocation5 + $0x4] sm:$0xf]
        %v584 = vld [vmem:[#allocation5 + $0x8] sm:$0xf]
        %v585 = vld [vmem:[#allocation5 + $0xc] sm:$0xf]
        %v586 = vld [vmem:[%s3] sm:$0x1]
        %v588 = vlaneseq
        %v589 = vshrl.u32 %v588, 7
        %v590 = vsub.s32 0, %v589
        %v591 = vrot.slane %v586, %v590
        %v597 = vunpack.c.l.b16 %v582
        %v598 = vunpack.c.l.b16 %v583
        %v599 = vunpack.c.l.b16 %v584
        %v600 = vunpack.c.l.b16 %v585
        %v601 = vpack.c.b16 %v598, %v597
        %v602 = vpack.c.b16 %v600, %v599
        %vm605 = vcmask 261120
        %v607 = vsel %vm605, %v581, 0
        %609 = vmatprep.subr.bf16.mxu0 0
        %610 = vmatpush1.bf16.msra.mxu0 %v601
        %611 = vmatprep.subr.bf16.mxu0 0
        %612 = vmatpush1.bf16.msra.mxu0 %v602
        %613 = vmatprep.subr.bf16.mxu0 0
        %614 = vmatpush1.bf16.msra.mxu0 0
        %615 = vmatprep.subr.bf16.mxu0 0
        %616 = vmatpush1.bf16.msra.mxu0 0
        %617 = vmatprep.subr.bf16.mxu0 0
        %618 = vmatpush1.bf16.msra.mxu0 0
        %619 = vmatprep.subr.bf16.mxu0 0
        %620 = vmatpush1.bf16.msra.mxu0 0
        %621 = vmatprep.subr.bf16.mxu0 0
        %622 = vmatpush1.bf16.msra.mxu0 0
        %623 = vmatprep.subr.bf16.mxu0 0
        %624 = vmatpush1.bf16.msra.mxu0 0
        %625 = vmatprep.subr.bf16.mxu0 0
        %626 = vmatpush1.bf16.msra.mxu0 0
        %627 = vmatprep.subr.bf16.mxu0 0
        %628 = vmatpush1.bf16.msra.mxu0 0
        %629 = vmatprep.subr.bf16.mxu0 0
        %630 = vmatpush1.bf16.msra.mxu0 0
        %631 = vmatprep.subr.bf16.mxu0 0
        %632 = vmatpush1.bf16.msra.mxu0 0
        %633 = vmatprep.subr.bf16.mxu0 0
        %634 = vmatpush1.bf16.msra.mxu0 0
        %635 = vmatprep.subr.bf16.mxu0 0
        %636 = vmatpush1.bf16.msra.mxu0 0
        %637 = vmatprep.subr.bf16.mxu0 0
        %638 = vmatpush1.bf16.msra.mxu0 0
        %639 = vmatprep.subr.bf16.mxu0 0
        %640 = vmatpush1.bf16.msra.mxu0 0
        %641 = vmatprep.mubr.bf16.mxu0 0
        %642 = vmatmul.mubr.bf16.gmra.mrb[0].mxu0 %v607
        %v643 = vpop.f32.mrb[0].mxu0
        %v644 = vadd.f32 %v591, %v643
        %v645 = vpop.f32.mrb[0].mxu0
        %v646 = vpop.f32.mrb[0].mxu0
        %v647 = vadd.f32 %v591, %v646
        %v648 = vpop.f32.mrb[0].mxu0
        %649 = vdwg.mxu0
        %v650 = vmax.f32 %v644, 0.0
        %v651 = vmax.f32 %v647, 0.0
        %v652 = vpack.c.bf16 %v651, %v650
        %v653 = vld [vmem:[%s577] sm:$0xf]
        %v654 = vld [vmem:[%s577 + $0x4] sm:$0xf]
        %v657 = vunpack.c.l.b16 %v653
        %v658 = vunpack.c.l.b16 %v654
        %v659 = vpack.c.b16 %v658, %v657
        %vm660 = vcmask 130048
        %v662 = vsel %vm660, %v659, 0
        %664 = vmatprep.subr.bf16.mxu0 0
        %665 = vmatpush1.bf16.msra.mxu0 %v652
        %666 = vmatprep.subr.bf16.mxu0 0
        %667 = vmatpush1.bf16.msra.mxu0 0
        %668 = vmatprep.subr.bf16.mxu0 0
        %669 = vmatpush1.bf16.msra.mxu0 0
        %670 = vmatprep.subr.bf16.mxu0 0
        %671 = vmatpush1.bf16.msra.mxu0 0
        %672 = vmatprep.subr.bf16.mxu0 0
        %673 = vmatpush1.bf16.msra.mxu0 0
        %674 = vmatprep.subr.bf16.mxu0 0
        %675 = vmatpush1.bf16.msra.mxu0 0
        %676 = vmatprep.subr.bf16.mxu0 0
        %677 = vmatpush1.bf16.msra.mxu0 0
        %678 = vmatprep.subr.bf16.mxu0 0
        %679 = vmatpush1.bf16.msra.mxu0 0
        %680 = vmatprep.subr.bf16.mxu0 0
        %681 = vmatpush1.bf16.msra.mxu0 0
        %682 = vmatprep.subr.bf16.mxu0 0
        %683 = vmatpush1.bf16.msra.mxu0 0
        %684 = vmatprep.subr.bf16.mxu0 0
        %685 = vmatpush1.bf16.msra.mxu0 0
        %686 = vmatprep.subr.bf16.mxu0 0
        %687 = vmatpush1.bf16.msra.mxu0 0
        %688 = vmatprep.subr.bf16.mxu0 0
        %689 = vmatpush1.bf16.msra.mxu0 0
        %690 = vmatprep.subr.bf16.mxu0 0
        %691 = vmatpush1.bf16.msra.mxu0 0
        %692 = vmatprep.subr.bf16.mxu0 0
        %693 = vmatpush1.bf16.msra.mxu0 0
        %694 = vmatprep.subr.bf16.mxu0 0
        %695 = vmatpush1.bf16.msra.mxu0 0
        %696 = vmatprep.mubr.bf16.mxu0 0
        %697 = vmatmul.mubr.bf16.gmra.mrb[0].mxu0 %v662
        %v698 = vpop.f32.mrb[0].mxu0
        %v699 = vadd.f32 0.0, %v698
        %v700 = vpop.f32.mrb[0].mxu0
        %v701 = vpop.f32.mrb[0].mxu0
        %v702 = vadd.f32 0.0, %v701
        %v703 = vpop.f32.mrb[0].mxu0
        %704 = vdwg.mxu0
        %v705 = vld [vmem:[%s4] sm:$0xf]
        %v706 = vld [vmem:[%s4 + $0x4] sm:$0xf]
        %v707 = vld [vmem:[%s4 + $0x8] sm:$0xf]
        %v708 = vld [vmem:[%s4 + $0xc] sm:$0xf]
        %v709 = vld [vmem:[%s4 + $0x10] sm:$0xf]
        %v710 = vld [vmem:[%s4 + $0x14] sm:$0xf]
        %v711 = vld [vmem:[%s4 + $0x18] sm:$0xf]
        %v712 = vld [vmem:[%s4 + $0x1c] sm:$0xf]
        %v713 = vld [vmem:[%s4 + $0x20] sm:$0xf]
        %v714 = vld [vmem:[%s4 + $0x24] sm:$0xf]
        %v715 = vld [vmem:[%s4 + $0x28] sm:$0xf]
        %v716 = vld [vmem:[%s4 + $0x2c] sm:$0xf]
        %v717 = vld [vmem:[%s4 + $0x30] sm:$0xf]
        %v718 = vld [vmem:[%s4 + $0x34] sm:$0xf]
        %v719 = vld [vmem:[%s4 + $0x38] sm:$0xf]
        %v720 = vld [vmem:[%s4 + $0x3c] sm:$0xf]
        %v721 = vpack.c.bf16 %v702, %v699
        %v722 = vld [vmem:[#allocation7] sm:$0xf]
        %v723 = vld [vmem:[#allocation7 + $0x4] sm:$0xf]
        %v724 = vld [vmem:[#allocation7 + $0x8] sm:$0xf]
        %v725 = vld [vmem:[#allocation7 + $0xc] sm:$0xf]
        %v726 = vld [vmem:[#allocation7 + $0x10] sm:$0xf]
        %v727 = vld [vmem:[#allocation7 + $0x14] sm:$0xf]
        %v728 = vld [vmem:[#allocation7 + $0x18] sm:$0xf]
        %v729 = vld [vmem:[#allocation7 + $0x1c] sm:$0xf]
        %v730 = vld [vmem:[#allocation7 + $0x20] sm:$0xf]
        %v731 = vld [vmem:[#allocation7 + $0x24] sm:$0xf]
        %v732 = vld [vmem:[#allocation7 + $0x28] sm:$0xf]
        %v733 = vld [vmem:[#allocation7 + $0x2c] sm:$0xf]
        %v734 = vld [vmem:[#allocation7 + $0x30] sm:$0xf]
        %v735 = vld [vmem:[#allocation7 + $0x34] sm:$0xf]
        %v736 = vld [vmem:[#allocation7 + $0x38] sm:$0xf]
        %v737 = vld [vmem:[#allocation7 + $0x3c] sm:$0xf]
        %v754 = vunpack.c.l.b16 %v722
        %v755 = vunpack.c.l.b16 %v723
        %v756 = vunpack.c.l.b16 %v724
        %v757 = vunpack.c.l.b16 %v725
        %v758 = vunpack.c.l.b16 %v726
        %v759 = vunpack.c.l.b16 %v727
        %v760 = vunpack.c.l.b16 %v728
        %v761 = vunpack.c.l.b16 %v729
        %v762 = vunpack.c.l.b16 %v730
        %v763 = vunpack.c.l.b16 %v731
        %v764 = vunpack.c.l.b16 %v732
        %v765 = vunpack.c.l.b16 %v733
        %v766 = vunpack.c.l.b16 %v734
        %v767 = vunpack.c.l.b16 %v735
        %v768 = vunpack.c.l.b16 %v736
        %v769 = vunpack.c.l.b16 %v737
        %v770 = vpack.c.b16 %v755, %v754
        %v771 = vpack.c.b16 %v757, %v756
        %v772 = vpack.c.b16 %v759, %v758
        %v773 = vpack.c.b16 %v761, %v760
        %v774 = vpack.c.b16 %v763, %v762
        %v775 = vpack.c.b16 %v765, %v764
        %v776 = vpack.c.b16 %v767, %v766
        %v777 = vpack.c.b16 %v769, %v768
        %786 = vmatprep.subr.bf16.mxu0 0
        %787 = vmatpush1.bf16.msra.mxu0 %v770
        %788 = vmatprep.subr.bf16.mxu0 0
        %789 = vmatpush1.bf16.msra.mxu0 %v771
        %790 = vmatprep.subr.bf16.mxu0 0
        %791 = vmatpush1.bf16.msra.mxu0 %v772
        %792 = vmatprep.subr.bf16.mxu0 0
        %793 = vmatpush1.bf16.msra.mxu0 %v773
        %794 = vmatprep.subr.bf16.mxu0 0
        %795 = vmatpush1.bf16.msra.mxu0 %v774
        %796 = vmatprep.subr.bf16.mxu0 0
        %797 = vmatpush1.bf16.msra.mxu0 %v775
        %798 = vmatprep.subr.bf16.mxu0 0
        %799 = vmatpush1.bf16.msra.mxu0 %v776
        %800 = vmatprep.subr.bf16.mxu0 0
        %801 = vmatpush1.bf16.msra.mxu0 %v777
        %802 = vmatprep.subr.bf16.mxu0 0
        %803 = vmatpush1.bf16.msra.mxu0 0
        %804 = vmatprep.subr.bf16.mxu0 0
        %805 = vmatpush1.bf16.msra.mxu0 0
        %806 = vmatprep.subr.bf16.mxu0 0
        %807 = vmatpush1.bf16.msra.mxu0 0
        %808 = vmatprep.subr.bf16.mxu0 0
        %809 = vmatpush1.bf16.msra.mxu0 0
        %810 = vmatprep.subr.bf16.mxu0 0
        %811 = vmatpush1.bf16.msra.mxu0 0
        %812 = vmatprep.subr.bf16.mxu0 0
        %813 = vmatpush1.bf16.msra.mxu0 0
        %814 = vmatprep.subr.bf16.mxu0 0
        %815 = vmatpush1.bf16.msra.mxu0 0
        %816 = vmatprep.subr.bf16.mxu0 0
        %817 = vmatpush1.bf16.msra.mxu0 0
        %818 = vmatprep.mubr.bf16.mxu0 0
        %819 = vmatmul.mubr.bf16.gmra.mrb[0].mxu0 %v721
        %v820 = vpop.f32.mrb[0].mxu0
        %v821 = vadd.f32 0.0, %v820
        %v822 = vpop.f32.mrb[0].mxu0
        %v823 = vpop.f32.mrb[0].mxu0
        %v824 = vadd.f32 0.0, %v823
        %v825 = vpop.f32.mrb[0].mxu0
        %826 = vdwg.mxu0
        %v843 = vunpack.c.l.b16 %v705
        %v844 = vunpack.c.l.b16 %v706
        %v845 = vunpack.c.l.b16 %v707
        %v846 = vunpack.c.l.b16 %v708
        %v847 = vunpack.c.l.b16 %v709
        %v848 = vunpack.c.l.b16 %v710
        %v849 = vunpack.c.l.b16 %v711
        %v850 = vunpack.c.l.b16 %v712
        %v851 = vunpack.c.l.b16 %v713
        %v852 = vunpack.c.l.b16 %v714
        %v853 = vunpack.c.l.b16 %v715
        %v854 = vunpack.c.l.b16 %v716
        %v855 = vunpack.c.l.b16 %v717
        %v856 = vunpack.c.l.b16 %v718
        %v857 = vunpack.c.l.b16 %v719
        %v858 = vunpack.c.l.b16 %v720
        %v859 = vpack.c.b16 %v844, %v843
        %v860 = vpack.c.b16 %v846, %v845
        %v861 = vpack.c.b16 %v848, %v847
        %v862 = vpack.c.b16 %v850, %v849
        %v863 = vpack.c.b16 %v852, %v851
        %v864 = vpack.c.b16 %v854, %v853
        %v865 = vpack.c.b16 %v856, %v855
        %v866 = vpack.c.b16 %v858, %v857
        %875 = vmatprep.subr.bf16.mxu0 0
        %876 = vmatpush1.bf16.msra.mxu0 %v859
        %877 = vmatprep.subr.bf16.mxu0 0
        %878 = vmatpush1.bf16.msra.mxu0 %v860
        %879 = vmatprep.subr.bf16.mxu0 0
        %880 = vmatpush1.bf16.msra.mxu0 %v861
        %881 = vmatprep.subr.bf16.mxu0 0
        %882 = vmatpush1.bf16.msra.mxu0 %v862
        %883 = vmatprep.subr.bf16.mxu0 0
        %884 = vmatpush1.bf16.msra.mxu0 %v863
        %885 = vmatprep.subr.bf16.mxu0 0
        %886 = vmatpush1.bf16.msra.mxu0 %v864
        %887 = vmatprep.subr.bf16.mxu0 0
        %888 = vmatpush1.bf16.msra.mxu0 %v865
        %889 = vmatprep.subr.bf16.mxu0 0
        %890 = vmatpush1.bf16.msra.mxu0 %v866
        %891 = vmatprep.subr.bf16.mxu0 0
        %892 = vmatpush1.bf16.msra.mxu0 0
        %893 = vmatprep.subr.bf16.mxu0 0
        %894 = vmatpush1.bf16.msra.mxu0 0
        %895 = vmatprep.subr.bf16.mxu0 0
        %896 = vmatpush1.bf16.msra.mxu0 0
        %897 = vmatprep.subr.bf16.mxu0 0
        %898 = vmatpush1.bf16.msra.mxu0 0
        %899 = vmatprep.subr.bf16.mxu0 0
        %900 = vmatpush1.bf16.msra.mxu0 0
        %901 = vmatprep.subr.bf16.mxu0 0
        %902 = vmatpush1.bf16.msra.mxu0 0
        %903 = vmatprep.subr.bf16.mxu0 0
        %904 = vmatpush1.bf16.msra.mxu0 0
        %905 = vmatprep.subr.bf16.mxu0 0
        %906 = vmatpush1.bf16.msra.mxu0 0
        %907 = vmatprep.mubr.bf16.mxu0 0
        %908 = vmatmul.mubr.bf16.gmra.mrb[0].mxu0 %v652
        %v909 = vpop.f32.mrb[0].mxu0
        %v910 = vadd.f32 %v821, %v909
        %v911 = vpop.f32.mrb[0].mxu0
        %v912 = vpop.f32.mrb[0].mxu0
        %v913 = vadd.f32 %v824, %v912
        %v914 = vpop.f32.mrb[0].mxu0
        %915 = vdwg.mxu0
        %v916 = vld [vmem:[%s6] sm:$0x1]
        %v918 = vlaneseq
        %v919 = vshrl.u32 %v918, 7
        %v920 = vsub.s32 0, %v919
        %v921 = vrot.slane %v916, %v920
        %v923 = vadd.f32 %v910, %v921
        %v924 = vadd.f32 %v913, %v921
        %v925 = vmax.f32 %v923, 0.0
        %v926 = vmax.f32 %v924, 0.0
        %v927 = vpack.c.bf16 %v926, %v925
        %v928 = vld [vmem:[#allocation8] sm:$0xf]
        %v929 = vld [vmem:[#allocation8 + $0x4] sm:$0xf]
        %v930 = vld [vmem:[#allocation8 + $0x8] sm:$0xf]
        %v931 = vld [vmem:[#allocation8 + $0xc] sm:$0xf]
        %v932 = vld [vmem:[#allocation8 + $0x10] sm:$0xf]
        %v933 = vld [vmem:[#allocation8 + $0x14] sm:$0xf]
        %v934 = vld [vmem:[#allocation8 + $0x18] sm:$0xf]
        %v935 = vld [vmem:[#allocation8 + $0x1c] sm:$0xf]
        %v936 = vld [vmem:[#allocation8 + $0x20] sm:$0xf]
        %v937 = vld [vmem:[#allocation8 + $0x24] sm:$0xf]
        %v938 = vld [vmem:[#allocation8 + $0x28] sm:$0xf]
        %v939 = vld [vmem:[#allocation8 + $0x2c] sm:$0xf]
        %v940 = vld [vmem:[#allocation8 + $0x30] sm:$0xf]
        %v941 = vld [vmem:[#allocation8 + $0x34] sm:$0xf]
        %v942 = vld [vmem:[#allocation8 + $0x38] sm:$0xf]
        %v943 = vld [vmem:[#allocation8 + $0x3c] sm:$0xf]
        %v944 = vld [vmem:[%s8] sm:$0x1]
        %v946 = vlaneseq
        %v947 = vshrl.u32 %v946, 7
        %v948 = vsub.s32 0, %v947
        %v949 = vrot.slane %v944, %v948
        %v967 = vunpack.c.l.b16 %v928
        %v968 = vunpack.c.l.b16 %v929
        %v969 = vunpack.c.l.b16 %v930
        %v970 = vunpack.c.l.b16 %v931
        %v971 = vunpack.c.l.b16 %v932
        %v972 = vunpack.c.l.b16 %v933
        %v973 = vunpack.c.l.b16 %v934
        %v974 = vunpack.c.l.b16 %v935
        %v975 = vunpack.c.l.b16 %v936
        %v976 = vunpack.c.l.b16 %v937
        %v977 = vunpack.c.l.b16 %v938
        %v978 = vunpack.c.l.b16 %v939
        %v979 = vunpack.c.l.b16 %v940
        %v980 = vunpack.c.l.b16 %v941
        %v981 = vunpack.c.l.b16 %v942
        %v982 = vunpack.c.l.b16 %v943
        %v983 = vpack.c.b16 %v968, %v967
        %v984 = vpack.c.b16 %v970, %v969
        %v985 = vpack.c.b16 %v972, %v971
        %v986 = vpack.c.b16 %v974, %v973
        %v987 = vpack.c.b16 %v976, %v975
        %v988 = vpack.c.b16 %v978, %v977
        %v989 = vpack.c.b16 %v980, %v979
        %v990 = vpack.c.b16 %v982, %v981
        %999 = vmatprep.subr.bf16.mxu0 0
        %1000 = vmatpush1.bf16.msra.mxu0 %v983
        %1001 = vmatprep.subr.bf16.mxu0 0
        %1002 = vmatpush1.bf16.msra.mxu0 %v984
        %1003 = vmatprep.subr.bf16.mxu0 0
        %1004 = vmatpush1.bf16.msra.mxu0 %v985
        %1005 = vmatprep.subr.bf16.mxu0 0
        %1006 = vmatpush1.bf16.msra.mxu0 %v986
        %1007 = vmatprep.subr.bf16.mxu0 0
        %1008 = vmatpush1.bf16.msra.mxu0 %v987
        %1009 = vmatprep.subr.bf16.mxu0 0
        %1010 = vmatpush1.bf16.msra.mxu0 %v988
        %1011 = vmatprep.subr.bf16.mxu0 0
        %1012 = vmatpush1.bf16.msra.mxu0 %v989
        %1013 = vmatprep.subr.bf16.mxu0 0
        %1014 = vmatpush1.bf16.msra.mxu0 %v990
        %1015 = vmatprep.subr.bf16.mxu0 0
        %1016 = vmatpush1.bf16.msra.mxu0 0
        %1017 = vmatprep.subr.bf16.mxu0 0
        %1018 = vmatpush1.bf16.msra.mxu0 0
        %1019 = vmatprep.subr.bf16.mxu0 0
        %1020 = vmatpush1.bf16.msra.mxu0 0
        %1021 = vmatprep.subr.bf16.mxu0 0
        %1022 = vmatpush1.bf16.msra.mxu0 0
        %1023 = vmatprep.subr.bf16.mxu0 0
        %1024 = vmatpush1.bf16.msra.mxu0 0
        %1025 = vmatprep.subr.bf16.mxu0 0
        %1026 = vmatpush1.bf16.msra.mxu0 0
        %1027 = vmatprep.subr.bf16.mxu0 0
        %1028 = vmatpush1.bf16.msra.mxu0 0
        %1029 = vmatprep.subr.bf16.mxu0 0
        %1030 = vmatpush1.bf16.msra.mxu0 0
        %1031 = vmatprep.mubr.bf16.mxu0 0
        %1032 = vmatmul.mubr.bf16.gmra.mrb[0].mxu0 %v927
        %v1033 = vpop.f32.mrb[0].mxu0
        %v1034 = vadd.f32 %v949, %v1033
        %v1035 = vpop.f32.mrb[0].mxu0
        %v1036 = vpop.f32.mrb[0].mxu0
        %v1037 = vadd.f32 %v949, %v1036
        %v1038 = vpop.f32.mrb[0].mxu0
        %1039 = vdwg.mxu0
        %v1040 = vmax.f32 %v1034, 0.0
        %v1041 = vmax.f32 %v1037, 0.0
        %v1042 = vpack.c.bf16 %v1041, %v1040
        %1043 = vmatprep.subr.bf16.mxu0 0
        %1044 = vmatpush1.bf16.msra.mxu0 %v1042
        %1045 = vmatprep.subr.bf16.mxu0 0
        %1046 = vmatpush1.bf16.msra.mxu0 0
        %1047 = vmatprep.subr.bf16.mxu0 0
        %1048 = vmatpush1.bf16.msra.mxu0 0
        %1049 = vmatprep.subr.bf16.mxu0 0
        %1050 = vmatpush1.bf16.msra.mxu0 0
        %1051 = vmatprep.subr.bf16.mxu0 0
        %1052 = vmatpush1.bf16.msra.mxu0 0
        %1053 = vmatprep.subr.bf16.mxu0 0
        %1054 = vmatpush1.bf16.msra.mxu0 0
        %1055 = vmatprep.subr.bf16.mxu0 0
        %1056 = vmatpush1.bf16.msra.mxu0 0
        %1057 = vmatprep.subr.bf16.mxu0 0
        %1058 = vmatpush1.bf16.msra.mxu0 0
        %1059 = vmatprep.subr.bf16.mxu0 0
        %1060 = vmatpush1.bf16.msra.mxu0 0
        %1061 = vmatprep.subr.bf16.mxu0 0
        %1062 = vmatpush1.bf16.msra.mxu0 0
        %1063 = vmatprep.subr.bf16.mxu0 0
        %1064 = vmatpush1.bf16.msra.mxu0 0
        %1065 = vmatprep.subr.bf16.mxu0 0
        %1066 = vmatpush1.bf16.msra.mxu0 0
        %1067 = vmatprep.subr.bf16.mxu0 0
        %1068 = vmatpush1.bf16.msra.mxu0 0
        %1069 = vmatprep.subr.bf16.mxu0 0
        %1070 = vmatpush1.bf16.msra.mxu0 0
        %1071 = vmatprep.subr.bf16.mxu0 0
        %1072 = vmatpush1.bf16.msra.mxu0 0
        %1073 = vmatprep.subr.bf16.mxu0 0
        %1074 = vmatpush1.bf16.msra.mxu0 0
        %1075 = vmatprep.mubr.bf16.mxu0 0
        %1076 = vmatmul.mubr.bf16.gmra.mrb[0].mxu0 %v662
        %v1077 = vpop.f32.mrb[0].mxu0
        %v1078 = vadd.f32 0.0, %v1077
        %v1079 = vpop.f32.mrb[0].mxu0
        %v1080 = vpop.f32.mrb[0].mxu0
        %v1081 = vadd.f32 0.0, %v1080
        %v1082 = vpop.f32.mrb[0].mxu0
        %1083 = vdwg.mxu0
        %v1084 = vld [vmem:[#allocation10] sm:$0xf]
        %v1085 = vld [vmem:[#allocation10 + $0x4] sm:$0xf]
        %v1086 = vld [vmem:[#allocation10 + $0x8] sm:$0xf]
        %v1087 = vld [vmem:[#allocation10 + $0xc] sm:$0xf]
        %v1088 = vld [vmem:[#allocation10 + $0x10] sm:$0xf]
        %v1089 = vld [vmem:[#allocation10 + $0x14] sm:$0xf]
        %v1090 = vld [vmem:[#allocation10 + $0x18] sm:$0xf]
        %v1091 = vld [vmem:[#allocation10 + $0x1c] sm:$0xf]
        %v1092 = vld [vmem:[#allocation10 + $0x20] sm:$0xf]
        %v1093 = vld [vmem:[#allocation10 + $0x24] sm:$0xf]
        %v1094 = vld [vmem:[#allocation10 + $0x28] sm:$0xf]
        %v1095 = vld [vmem:[#allocation10 + $0x2c] sm:$0xf]
        %v1096 = vld [vmem:[#allocation10 + $0x30] sm:$0xf]
        %v1097 = vld [vmem:[#allocation10 + $0x34] sm:$0xf]
        %v1098 = vld [vmem:[#allocation10 + $0x38] sm:$0xf]
        %v1099 = vld [vmem:[#allocation10 + $0x3c] sm:$0xf]
        %v1100 = vpack.c.bf16 %v1081, %v1078
        %v1101 = vld [vmem:[#allocation11] sm:$0xf]
        %v1102 = vld [vmem:[#allocation11 + $0x4] sm:$0xf]
        %v1103 = vld [vmem:[#allocation11 + $0x8] sm:$0xf]
        %v1104 = vld [vmem:[#allocation11 + $0xc] sm:$0xf]
        %v1105 = vld [vmem:[#allocation11 + $0x10] sm:$0xf]
        %v1106 = vld [vmem:[#allocation11 + $0x14] sm:$0xf]
        %v1107 = vld [vmem:[#allocation11 + $0x18] sm:$0xf]
        %v1108 = vld [vmem:[#allocation11 + $0x1c] sm:$0xf]
        %v1109 = vld [vmem:[#allocation11 + $0x20] sm:$0xf]
        %v1110 = vld [vmem:[#allocation11 + $0x24] sm:$0xf]
        %v1111 = vld [vmem:[#allocation11 + $0x28] sm:$0xf]
        %v1112 = vld [vmem:[#allocation11 + $0x2c] sm:$0xf]
        %v1113 = vld [vmem:[#allocation11 + $0x30] sm:$0xf]
        %v1114 = vld [vmem:[#allocation11 + $0x34] sm:$0xf]
        %v1115 = vld [vmem:[#allocation11 + $0x38] sm:$0xf]
        %v1116 = vld [vmem:[#allocation11 + $0x3c] sm:$0xf]
        %v1133 = vunpack.c.l.b16 %v1101
        %v1134 = vunpack.c.l.b16 %v1102
        %v1135 = vunpack.c.l.b16 %v1103
        %v1136 = vunpack.c.l.b16 %v1104
        %v1137 = vunpack.c.l.b16 %v1105
        %v1138 = vunpack.c.l.b16 %v1106
        %v1139 = vunpack.c.l.b16 %v1107
        %v1140 = vunpack.c.l.b16 %v1108
        %v1141 = vunpack.c.l.b16 %v1109
        %v1142 = vunpack.c.l.b16 %v1110
        %v1143 = vunpack.c.l.b16 %v1111
        %v1144 = vunpack.c.l.b16 %v1112
        %v1145 = vunpack.c.l.b16 %v1113
        %v1146 = vunpack.c.l.b16 %v1114
        %v1147 = vunpack.c.l.b16 %v1115
        %v1148 = vunpack.c.l.b16 %v1116
        %v1149 = vpack.c.b16 %v1134, %v1133
        %v1150 = vpack.c.b16 %v1136, %v1135
        %v1151 = vpack.c.b16 %v1138, %v1137
        %v1152 = vpack.c.b16 %v1140, %v1139
        %v1153 = vpack.c.b16 %v1142, %v1141
        %v1154 = vpack.c.b16 %v1144, %v1143
        %v1155 = vpack.c.b16 %v1146, %v1145
        %v1156 = vpack.c.b16 %v1148, %v1147
        %1165 = vmatprep.subr.bf16.mxu0 0
        %1166 = vmatpush1.bf16.msra.mxu0 %v1149
        %1167 = vmatprep.subr.bf16.mxu0 0
        %1168 = vmatpush1.bf16.msra.mxu0 %v1150
        %1169 = vmatprep.subr.bf16.mxu0 0
        %1170 = vmatpush1.bf16.msra.mxu0 %v1151
        %1171 = vmatprep.subr.bf16.mxu0 0
        %1172 = vmatpush1.bf16.msra.mxu0 %v1152
        %1173 = vmatprep.subr.bf16.mxu0 0
        %1174 = vmatpush1.bf16.msra.mxu0 %v1153
        %1175 = vmatprep.subr.bf16.mxu0 0
        %1176 = vmatpush1.bf16.msra.mxu0 %v1154
        %1177 = vmatprep.subr.bf16.mxu0 0
        %1178 = vmatpush1.bf16.msra.mxu0 %v1155
        %1179 = vmatprep.subr.bf16.mxu0 0
        %1180 = vmatpush1.bf16.msra.mxu0 %v1156
        %1181 = vmatprep.subr.bf16.mxu0 0
        %1182 = vmatpush1.bf16.msra.mxu0 0
        %1183 = vmatprep.subr.bf16.mxu0 0
        %1184 = vmatpush1.bf16.msra.mxu0 0
        %1185 = vmatprep.subr.bf16.mxu0 0
        %1186 = vmatpush1.bf16.msra.mxu0 0
        %1187 = vmatprep.subr.bf16.mxu0 0
        %1188 = vmatpush1.bf16.msra.mxu0 0
        %1189 = vmatprep.subr.bf16.mxu0 0
        %1190 = vmatpush1.bf16.msra.mxu0 0
        %1191 = vmatprep.subr.bf16.mxu0 0
        %1192 = vmatpush1.bf16.msra.mxu0 0
        %1193 = vmatprep.subr.bf16.mxu0 0
        %1194 = vmatpush1.bf16.msra.mxu0 0
        %1195 = vmatprep.subr.bf16.mxu0 0
        %1196 = vmatpush1.bf16.msra.mxu0 0
        %1197 = vmatprep.mubr.bf16.mxu0 0
        %1198 = vmatmul.mubr.bf16.gmra.mrb[0].mxu0 %v1100
        %v1199 = vpop.f32.mrb[0].mxu0
        %v1200 = vadd.f32 0.0, %v1199
        %v1201 = vpop.f32.mrb[0].mxu0
        %v1202 = vpop.f32.mrb[0].mxu0
        %v1203 = vadd.f32 0.0, %v1202
        %v1204 = vpop.f32.mrb[0].mxu0
        %1205 = vdwg.mxu0
        %v1222 = vunpack.c.l.b16 %v1084
        %v1223 = vunpack.c.l.b16 %v1085
        %v1224 = vunpack.c.l.b16 %v1086
        %v1225 = vunpack.c.l.b16 %v1087
        %v1226 = vunpack.c.l.b16 %v1088
        %v1227 = vunpack.c.l.b16 %v1089
        %v1228 = vunpack.c.l.b16 %v1090
        %v1229 = vunpack.c.l.b16 %v1091
        %v1230 = vunpack.c.l.b16 %v1092
        %v1231 = vunpack.c.l.b16 %v1093
        %v1232 = vunpack.c.l.b16 %v1094
        %v1233 = vunpack.c.l.b16 %v1095
        %v1234 = vunpack.c.l.b16 %v1096
        %v1235 = vunpack.c.l.b16 %v1097
        %v1236 = vunpack.c.l.b16 %v1098
        %v1237 = vunpack.c.l.b16 %v1099
        %v1238 = vpack.c.b16 %v1223, %v1222
        %v1239 = vpack.c.b16 %v1225, %v1224
        %v1240 = vpack.c.b16 %v1227, %v1226
        %v1241 = vpack.c.b16 %v1229, %v1228
        %v1242 = vpack.c.b16 %v1231, %v1230
        %v1243 = vpack.c.b16 %v1233, %v1232
        %v1244 = vpack.c.b16 %v1235, %v1234
        %v1245 = vpack.c.b16 %v1237, %v1236
        %1254 = vmatprep.subr.bf16.mxu0 0
        %1255 = vmatpush1.bf16.msra.mxu0 %v1238
        %1256 = vmatprep.subr.bf16.mxu0 0
        %1257 = vmatpush1.bf16.msra.mxu0 %v1239
        %1258 = vmatprep.subr.bf16.mxu0 0
        %1259 = vmatpush1.bf16.msra.mxu0 %v1240
        %1260 = vmatprep.subr.bf16.mxu0 0
        %1261 = vmatpush1.bf16.msra.mxu0 %v1241
        %1262 = vmatprep.subr.bf16.mxu0 0
        %1263 = vmatpush1.bf16.msra.mxu0 %v1242
        %1264 = vmatprep.subr.bf16.mxu0 0
        %1265 = vmatpush1.bf16.msra.mxu0 %v1243
        %1266 = vmatprep.subr.bf16.mxu0 0
        %1267 = vmatpush1.bf16.msra.mxu0 %v1244
        %1268 = vmatprep.subr.bf16.mxu0 0
        %1269 = vmatpush1.bf16.msra.mxu0 %v1245
        %1270 = vmatprep.subr.bf16.mxu0 0
        %1271 = vmatpush1.bf16.msra.mxu0 0
        %1272 = vmatprep.subr.bf16.mxu0 0
        %1273 = vmatpush1.bf16.msra.mxu0 0
        %1274 = vmatprep.subr.bf16.mxu0 0
        %1275 = vmatpush1.bf16.msra.mxu0 0
        %1276 = vmatprep.subr.bf16.mxu0 0
        %1277 = vmatpush1.bf16.msra.mxu0 0
        %1278 = vmatprep.subr.bf16.mxu0 0
        %1279 = vmatpush1.bf16.msra.mxu0 0
        %1280 = vmatprep.subr.bf16.mxu0 0
        %1281 = vmatpush1.bf16.msra.mxu0 0
        %1282 = vmatprep.subr.bf16.mxu0 0
        %1283 = vmatpush1.bf16.msra.mxu0 0
        %1284 = vmatprep.subr.bf16.mxu0 0
        %1285 = vmatpush1.bf16.msra.mxu0 0
        %1286 = vmatprep.mubr.bf16.mxu0 0
        %1287 = vmatmul.mubr.bf16.gmra.mrb[0].mxu0 %v1042
        %v1288 = vpop.f32.mrb[0].mxu0
        %v1289 = vadd.f32 %v1200, %v1288
        %v1290 = vpop.f32.mrb[0].mxu0
        %v1291 = vpop.f32.mrb[0].mxu0
        %v1292 = vadd.f32 %v1203, %v1291
        %v1293 = vpop.f32.mrb[0].mxu0
        %1294 = vdwg.mxu0
        %v1295 = vld [vmem:[%s11] sm:$0x1]
        %v1297 = vlaneseq
        %v1298 = vshrl.u32 %v1297, 7
        %v1299 = vsub.s32 0, %v1298
        %v1300 = vrot.slane %v1295, %v1299
        %v1302 = vadd.f32 %v1289, %v1300
        %v1303 = vadd.f32 %v1292, %v1300
        %v1304 = vmax.f32 %v1302, 0.0
        %v1305 = vmax.f32 %v1303, 0.0
        %v1306 = vadd.f32 %v1304, %v1305
        %v1307 = vrot.slane %v1306, 4
        %v1308 = vadd.f32 %v1306, %v1307
        %v1309 = vrot.slane %v1308, 2
        %v1310 = vadd.f32 %v1308, %v1309
        %v1311 = vrot.slane %v1310, 1
        %v1312 = vadd.f32 %v1310, %v1311
        %v1313 = vmul.f32 %v1312, 0.0625
        %v1314 = vpack.c.bf16 %v1313, %v1313
        %v1315 = vld [vmem:[%s12] sm:$0xf]
        %v1316 = vld [vmem:[%s12 + $0x4] sm:$0xf]
        %v1317 = vld [vmem:[%s12 + $0x8] sm:$0xf]
        %v1318 = vld [vmem:[%s12 + $0xc] sm:$0xf]
        %v1319 = vld [vmem:[%s12 + $0x10] sm:$0xf]
        %v1320 = vld [vmem:[%s12 + $0x14] sm:$0xf]
        %v1321 = vld [vmem:[%s12 + $0x18] sm:$0xf]
        %v1322 = vld [vmem:[%s12 + $0x1c] sm:$0xf]
        %v1323 = vld [vmem:[%s12 + $0x20] sm:$0xf]
        %v1324 = vld [vmem:[%s12 + $0x24] sm:$0xf]
        %v1325 = vld [vmem:[%s12 + $0x28] sm:$0xf]
        %v1326 = vld [vmem:[%s12 + $0x2c] sm:$0xf]
        %v1327 = vld [vmem:[%s12 + $0x30] sm:$0xf]
        %v1328 = vld [vmem:[%s12 + $0x34] sm:$0xf]
        %v1329 = vld [vmem:[%s12 + $0x38] sm:$0xf]
        %v1330 = vld [vmem:[%s12 + $0x3c] sm:$0xf]
        %v1331 = vld [vmem:[%s13] sm:$0x1]
        %v1348 = vunpack.c.l.b16 %v1315
        %v1349 = vunpack.c.l.b16 %v1316
        %v1350 = vunpack.c.l.b16 %v1317
        %v1351 = vunpack.c.l.b16 %v1318
        %v1352 = vunpack.c.l.b16 %v1319
        %v1353 = vunpack.c.l.b16 %v1320
        %v1354 = vunpack.c.l.b16 %v1321
        %v1355 = vunpack.c.l.b16 %v1322
        %v1356 = vunpack.c.l.b16 %v1323
        %v1357 = vunpack.c.l.b16 %v1324
        %v1358 = vunpack.c.l.b16 %v1325
        %v1359 = vunpack.c.l.b16 %v1326
        %v1360 = vunpack.c.l.b16 %v1327
        %v1361 = vunpack.c.l.b16 %v1328
        %v1362 = vunpack.c.l.b16 %v1329
        %v1363 = vunpack.c.l.b16 %v1330
        %v1364 = vpack.c.b16 %v1349, %v1348
        %v1365 = vpack.c.b16 %v1351, %v1350
        %v1366 = vpack.c.b16 %v1353, %v1352
        %v1367 = vpack.c.b16 %v1355, %v1354
        %v1368 = vpack.c.b16 %v1357, %v1356
        %v1369 = vpack.c.b16 %v1359, %v1358
        %v1370 = vpack.c.b16 %v1361, %v1360
        %v1371 = vpack.c.b16 %v1363, %v1362
        %1380 = vmatprep.subr.bf16.mxu0 0
        %1381 = vmatpush1.bf16.msra.mxu0 %v1364
        %1382 = vmatprep.subr.bf16.mxu0 0
        %1383 = vmatpush1.bf16.msra.mxu0 %v1365
        %1384 = vmatprep.subr.bf16.mxu0 0
        %1385 = vmatpush1.bf16.msra.mxu0 %v1366
        %1386 = vmatprep.subr.bf16.mxu0 0
        %1387 = vmatpush1.bf16.msra.mxu0 %v1367
        %1388 = vmatprep.subr.bf16.mxu0 0
        %1389 = vmatpush1.bf16.msra.mxu0 %v1368
        %1390 = vmatprep.subr.bf16.mxu0 0
        %1391 = vmatpush1.bf16.msra.mxu0 %v1369
        %1392 = vmatprep.subr.bf16.mxu0 0
        %1393 = vmatpush1.bf16.msra.mxu0 %v1370
        %1394 = vmatprep.subr.bf16.mxu0 0
        %1395 = vmatpush1.bf16.msra.mxu0 %v1371
        %1396 = vmatprep.subr.bf16.mxu0 0
        %1397 = vmatpush1.bf16.msra.mxu0 0
        %1398 = vmatprep.subr.bf16.mxu0 0
        %1399 = vmatpush1.bf16.msra.mxu0 0
        %1400 = vmatprep.subr.bf16.mxu0 0
        %1401 = vmatpush1.bf16.msra.mxu0 0
        %1402 = vmatprep.subr.bf16.mxu0 0
        %1403 = vmatpush1.bf16.msra.mxu0 0
        %1404 = vmatprep.subr.bf16.mxu0 0
        %1405 = vmatpush1.bf16.msra.mxu0 0
        %1406 = vmatprep.subr.bf16.mxu0 0
        %1407 = vmatpush1.bf16.msra.mxu0 0
        %1408 = vmatprep.subr.bf16.mxu0 0
        %1409 = vmatpush1.bf16.msra.mxu0 0
        %1410 = vmatprep.subr.bf16.mxu0 0
        %1411 = vmatpush1.bf16.msra.mxu0 0
        %1412 = vmatprep.mubr.bf16.mxu0 0
        %1413 = vmatmul.mubr.bf16.gmra.mrb[0].mxu0 %v1314
        %v1414 = vpop.f32.mrb[0].mxu0
        %v1415 = vadd.f32 %v1331, %v1414
        %v1416 = vpop.f32.mrb[0].mxu0
        %v1417 = vpop.f32.mrb[0].mxu0
        %v1418 = vpop.f32.mrb[0].mxu0
        %1419 = vdwg.mxu0
        %vm1420 = vcmask 57344
        %1421 = vst.msk [vmem:[%s572] sm:$0x1] %vm1420, %v1415
        %s1422 = sand.u32 %s346, 1
        %s1423 = scalar_lea.sflag [#allocation4], %s1422
        %s1424 = sand.u32 %s346, 1
        %s1425 = scalar_lea.vmem [#allocation13], %s1424
        // Predicated region
        $region101: #{tpu_custom_call.1} parent=75 // pred_check
          %p1426 = pneg %p356
        $region102: #{tpu_custom_call.1} parent=75 // pred_check_branch
          %1428 = sbr.rel (%p1426) target = $region104
        $region103: #{tpu_custom_call.1} parent=75 // pred_region
          %s1430 = ssub.s32 16, 16
          %1431 = vsyncadd %s1423, %s1430
          %s1432 = smul.addr %s34, 16
          %s1433 = scalar_lea.hbm %s14, %s1432
          %s1435 = sshll.u32 %s1425, 4
          %s1436 = int_to_ptr.vmem [resolvable:$true] %s1435
          %1438 = dma.vmem_to_hbm [thread:$0]  %s1436, 16, %s1433, %s1423
        $region104: #{tpu_custom_call.1} parent=75 // pred_fallthru
          _
      $region76: #{tpu_custom_call.1} parent=5 // pred_fallthru
        _
      %p1439 = scmp.le.s32.totalorder 2, %s29
      // Predicated region
      $region105: #{tpu_custom_call.1} parent=5 // pred_check
        %p1440 = pneg %p1439
      $region106: #{tpu_custom_call.1} parent=5 // pred_check_branch
        %1442 = sbr.rel (%p1440) target = $region108
      $region107: #{tpu_custom_call.1} parent=5 // pred_region
        %s1443 = ssub.s32 %s29, 2
        // Predicated region
        $region109: #{tpu_custom_call.1} parent=107 // pred_check
          %p1444 = pneg %p362
        $region110: #{tpu_custom_call.1} parent=107 // pred_check_branch
          %1446 = sbr.rel (%p1444) target = $region112
        $region111: #{tpu_custom_call.1} parent=107 // pred_region
          %s1447 = sand.u32 %s347, 1
          %s1448 = scalar_lea.sflag [#allocation4], %s1447
          %s1449 = sand.u32 %s347, 1
          %s1450 = scalar_lea.vmem [#allocation13], %s1449
          %1451 = dma.done %s1448, 16
        $region112: #{tpu_custom_call.1} parent=107 // pred_fallthru
          _
      $region108: #{tpu_custom_call.1} parent=5 // pred_fallthru
        _
    $region6: #{tpu_custom_call.1} parent=1 // loop_footer
      %s33 = sadd.s32 1, %s29
    $region7: #{tpu_custom_call.1} parent=1 // loop_footer_branch
      %28 = sbr.rel target = $region3
    $region8: #{tpu_custom_call.1} parent=1 // loop_exit
      _
    %1452 = vsyncpa [#allocation3], 1
    %s1453 = scalar_lea.sflag [#allocation3], 1
    %1454 = vsyncpa %s1453, 1
    %1455 = vsyncpa [#allocation6], 1
    %1456 = vsyncpa [#allocation9], 1
    %1457 = vsyncpa [#allocation12], 1
    %1458 = vsyncpa [#allocation4], 1
    %s1459 = scalar_lea.sflag [#allocation4], 1
    %1460 = vsyncpa %s1459, 1

</llo_original>
